<compile_context>
chip_gen: v7x
topology: tpu7x:2x2x1
jax: 0.10.0
libtpu: 0.0.40
codegen_flags: <defaults>
</compile_context>

<pallas_src>
import functools

import jax
import jax.numpy as jnp
from jax.experimental import pallas as pl
from jax.experimental.pallas import tpu as pltpu

EPS = 1e-5                       # nn.BatchNorm2d default
LANE = 128                       # TPU lane width; matmul K / Cout padding target
VMEM_LIMIT = 48 * 1024 * 1024    # > 32 MiB for v5e/v6e tiles, < 64 MiB physical on v7x

_CP_ARB = pltpu.CompilerParams(dimension_semantics=("arbitrary",), vmem_limit_bytes=VMEM_LIMIT)
_CP_PAR = pltpu.CompilerParams(dimension_semantics=("parallel",), vmem_limit_bytes=VMEM_LIMIT)


# ---------------------------------------------------------------------------
# Kernel 1: 2x2 max-pool + per-image BN1 batch-stat partials (sum, sum-of-squares)
#   x arrives as (1, Hp, 2, Wp, 2*Cin): the H-pair lives in dim 2, the W-pair in the
#   upper half of the last dim (free row-major reshape done in glue, no HBM copy).
# ---------------------------------------------------------------------------
def pool_stats_kernel(x_ref, pooled_ref, stats_ref):
    cin = pooled_ref.shape[-1]

    r0 = x_ref[0, :, 0, :, :]                       # (Hp, Wp, 2*Cin)  rows 2h
    r1 = x_ref[0, :, 1, :, :]                       # (Hp, Wp, 2*Cin)  rows 2h+1
    m = jnp.maximum(r0, r1)                         # max over the H pair
    p = jnp.maximum(m[:, :, :cin], m[:, :, cin:])   # max over the W pair -> (Hp, Wp, Cin)
    pooled_ref[0] = p

    # per-image partial statistics for BN1 (reduced over N in glue)
    ps = jnp.sum(p, axis=0)                         # (Wp, Cin)
    ss = jnp.sum(p * p, axis=0)
    stats_ref[0, 0:1, :] = jnp.sum(ps, axis=0, keepdims=True)   # (1, Cin)
    stats_ref[0, 1:2, :] = jnp.sum(ss, axis=0, keepdims=True)


def pallas_pool_stats(x5):
    N, Hp, _, Wp, c2 = x5.shape
    cin = c2 // 2
    return pl.pallas_call(
        pool_stats_kernel,
        grid=(N,),
        in_specs=[pl.BlockSpec((1, Hp, 2, Wp, c2), lambda n: (n, 0, 0, 0, 0))],
        out_specs=[pl.BlockSpec((1, Hp, Wp, cin), lambda n: (n, 0, 0, 0)),
                   pl.BlockSpec((1, 2, cin), lambda n: (n, 0, 0))],
        out_shape=[jax.ShapeDtypeStruct((N, Hp, Wp, cin), jnp.float32),
                   jax.ShapeDtypeStruct((N, 2, cin), jnp.float32)],
        compiler_params=_CP_PAR,
    )(x5)


# ---------------------------------------------------------------------------
# Kernel 2: BN1+ReLU -> 3x3 conv1 (+ projection shortcut in extra output columns,
#           folded into the SAME matmul) -> per-image BN2 batch-stat partials.
#   The conv is ONE (Hp*Wp, 128) @ (128, 128) bf16 matmul: the 9 taps are folded into
#   the contraction dim (tap t -> patch columns [t*Cin:(t+1)*Cin]).
# ---------------------------------------------------------------------------
def conv1_kernel(pooled_ref, s1_ref, t1_ref, w_ref, y_ref, stats_ref, pad_sc, patch_sc):
    n = pl.program_id(0)
    _, hp, wp, cin = pooled_ref.shape
    lane = patch_sc.shape[-1]

    @pl.when(n == 0)
    def _init():
        # halo ring of pad_sc and columns [9*cin:lane] of patch_sc stay zero forever
        pad_sc[...] = jnp.zeros_like(pad_sc)
        patch_sc[...] = jnp.zeros_like(patch_sc)

    # BN1 (precomputed per-channel scale/shift) + ReLU, fused with the conv
    a = jnp.maximum(pooled_ref[0] * s1_ref[0] + t1_ref[0], 0.0)        # (hp, wp, cin) f32
    pad_sc[1:hp + 1, 1:wp + 1, :] = a

    # im2col into the contraction dim: tap (dy,dx) -> columns [t*cin:(t+1)*cin]
    for t in range(9):
        dy, dx = divmod(t, 3)
        patch_sc[:, :, t * cin:(t + 1) * cin] = pad_sc[dy:dy + hp, dx:dx + wp, :]

    patch = patch_sc[...].reshape(hp * wp, lane).astype(jnp.bfloat16)
    acc = jnp.dot(patch, w_ref[...], preferred_element_type=jnp.float32)   # (hp*wp, 128)

    y_ref[0] = acc.reshape(hp, wp, lane).astype(jnp.bfloat16)

    # per-image partial statistics for BN2 (f32, pre-bf16-cast values)
    stats_ref[0, 0:1, :] = jnp.sum(acc, axis=0, keepdims=True)
    stats_ref[0, 1:2, :] = jnp.sum(acc * acc, axis=0, keepdims=True)


def pallas_conv1(pooled, s1, t1, w1p):
    N, Hp, Wp, Cin = pooled.shape
    return pl.pallas_call(
        conv1_kernel,
        grid=(N,),
        in_specs=[pl.BlockSpec((1, Hp, Wp, Cin), lambda n: (n, 0, 0, 0)),
                  pl.BlockSpec((1, Cin), lambda n: (0, 0)),
                  pl.BlockSpec((1, Cin), lambda n: (0, 0)),
                  pl.BlockSpec((LANE, LANE), lambda n: (0, 0))],
        out_specs=[pl.BlockSpec((1, Hp, Wp, LANE), lambda n: (n, 0, 0, 0)),
                   pl.BlockSpec((1, 2, LANE), lambda n: (n, 0, 0))],
        out_shape=[jax.ShapeDtypeStruct((N, Hp, Wp, LANE), jnp.bfloat16),
                   jax.ShapeDtypeStruct((N, 2, LANE), jnp.float32)],
        scratch_shapes=[pltpu.VMEM((Hp + 2, Wp + 2, Cin), jnp.float32),
                        pltpu.VMEM((Hp, Wp, LANE), jnp.float32)],
        compiler_params=_CP_ARB,   # scratch halos are zeroed once -> keep sequential
    )(pooled, s1, t1, w1p)


# ---------------------------------------------------------------------------
# Kernel 3: BN2+ReLU -> 3x3 conv2 (taps folded into K, one matmul) -> residual add.
#   Shortcut: projection output lives in y columns [0:Cout] (non-identity case) and is
#   added with a single full-lane store; identity case adds the pooled input via a
#   zero-once lane-padded scratch (also a single full-lane store).
# ---------------------------------------------------------------------------
def conv2_kernel(y_ref, s2_ref, t2_ref, w_ref, *rest, cout, c1_off, identity):
    if identity:
        sc_ref, out_ref, pad_sc, patch_sc, scpad_sc = rest
    else:
        out_ref, pad_sc, patch_sc = rest
    n = pl.program_id(0)
    _, hp, wp, lane = y_ref.shape

    @pl.when(n == 0)
    def _init():
        pad_sc[...] = jnp.zeros_like(pad_sc)
        patch_sc[...] = jnp.zeros_like(patch_sc)
        if identity:
            scpad_sc[...] = jnp.zeros_like(scpad_sc)

    # BN2 + ReLU on the conv1 columns only
    y_c = y_ref[0, :, :, c1_off:c1_off + cout].astype(jnp.float32)     # (hp, wp, cout)
    s2 = s2_ref[0, c1_off:c1_off + cout]
    t2 = t2_ref[0, c1_off:c1_off + cout]
    b = jnp.maximum(y_c * s2 + t2, 0.0)
    pad_sc[1:hp + 1, 1:wp + 1, :] = b

    for t in range(9):
        dy, dx = divmod(t, 3)
        patch_sc[:, :, t * cout:(t + 1) * cout] = pad_sc[dy:dy + hp, dx:dx + wp, :]

    patch = patch_sc[...].reshape(hp * wp, lane).astype(jnp.bfloat16)
    acc = jnp.dot(patch, w_ref[...],
                  preferred_element_type=jnp.float32).reshape(hp, wp, lane)

    if identity:
        # pooled shortcut, zero-padded to 128 lanes once -> single full-lane store
        scpad_sc[:, :, :cout] = sc_ref[0]
        out_ref[0] = acc + scpad_sc[...]
    else:
        # projection shortcut sits in y columns [0:cout]; conv2 lands in [0:cout];
        # higher columns are finite garbage and are sliced away in glue.
        out_ref[0] = acc + y_ref[0].astype(jnp.float32)


def pallas_conv2(y, s2, t2, w2p, *, cout, c1_off, shortcut=None):
    N, Hp, Wp, _ = y.shape
    identity = shortcut is not None
    kern = functools.partial(conv2_kernel, cout=cout, c1_off=c1_off, identity=identity)

    in_specs = [pl.BlockSpec((1, Hp, Wp, LANE), lambda n: (n, 0, 0, 0)),
                pl.BlockSpec((1, LANE), lambda n: (0, 0)),
                pl.BlockSpec((1, LANE), lambda n: (0, 0)),
                pl.BlockSpec((LANE, LANE), lambda n: (0, 0))]
    args = [y, s2, t2, w2p]
    scratch = [pltpu.VMEM((Hp + 2, Wp + 2, cout), jnp.float32),
               pltpu.VMEM((Hp, Wp, LANE), jnp.float32)]
    if identity:
        Cin = shortcut.shape[-1]
        in_specs.append(pl.BlockSpec((1, Hp, Wp, Cin), lambda n: (n, 0, 0, 0)))
        args.append(shortcut)
        scratch.append(pltpu.VMEM((Hp, Wp, LANE), jnp.float32))

    return pl.pallas_call(
        kern,
        grid=(N,),
        in_specs=in_specs,
        out_specs=pl.BlockSpec((1, Hp, Wp, LANE), lambda n: (n, 0, 0, 0)),
        out_shape=jax.ShapeDtypeStruct((N, Hp, Wp, LANE), jnp.float32),
        scratch_shapes=scratch,
        compiler_params=_CP_ARB,
    )(*args)


# ---------------------------------------------------------------------------
# Parameter packing (done once, outside the jitted forward): taps folded into K.
# ---------------------------------------------------------------------------
def prepare_params(raw, in_channels, out_channels):
    Cin, Cout = in_channels, out_channels
    identity = (Cin == Cout)
    c1_off = 0 if identity else Cout     # output column where conv1 lands in K2
    assert 9 * Cin <= LANE and 9 * Cout <= LANE
    assert identity or 2 * Cout <= LANE

    def pack_k(w_oihw, cin):
        # PyTorch (O, I, kh, kw) -> rows k = (dy*3 + dx)*cin + ci, cols = O
        w_hwio = jnp.transpose(w_oihw, (2, 3, 1, 0))            # (3, 3, I, O)
        return w_hwio.reshape(9 * cin, w_oihw.shape[0])

    w1 = jnp.zeros((LANE, LANE), jnp.float32)
    w1 = w1.at[:9 * Cin, c1_off:c1_off + Cout].set(pack_k(raw["w_conv1"], Cin))
    if not identity:
        w1 = w1.at[:9 * Cin, 0:Cout].set(pack_k(raw["w_proj"], Cin))
    w1p = w1.astype(jnp.bfloat16)

    w2 = jnp.zeros((LANE, LANE), jnp.float32)
    w2 = w2.at[:9 * Cout, 0:Cout].set(pack_k(raw["w_conv2"], Cout))
    w2p = w2.astype(jnp.bfloat16)

    gamma2v = jnp.zeros((LANE,), jnp.float32).at[c1_off:c1_off + Cout].set(raw["gamma2"])
    beta2v = jnp.zeros((LANE,), jnp.float32).at[c1_off:c1_off + Cout].set(raw["beta2"])

    return dict(w1p=w1p, w2p=w2p,
                gamma1=raw["gamma1"], beta1=raw["beta1"],
                gamma2v=gamma2v, beta2v=beta2v)


# ---------------------------------------------------------------------------
# Forward (NCHW in / NCHW out; NHWC + 128-lane padded intermediates internally)
# BatchNorm follows PyTorch training-mode forward semantics (biased batch stats);
# the running-stat momentum update is a training side effect, not part of the output.
# ---------------------------------------------------------------------------
def down_forward(x_nchw, prep, in_channels, out_channels):
    N, _, H, W = x_nchw.shape
    Hp, Wp = H // 2, W // 2
    Cin, Cout = in_channels, out_channels
    identity = (Cin == Cout)
    c1_off = 0 if identity else Cout

    x = jnp.transpose(x_nchw, (0, 2, 3, 1))[:, :2 * Hp, :2 * Wp, :]    # boundary NCHW->NHWC
    x5 = x.reshape(N, Hp, 2, Wp, 2 * Cin)        # free row-major reshape (pool pairs exposed)

    pooled, stats1 = pallas_pool_stats(x5)

    m = jnp.float32(N * Hp * Wp)
    mean1 = jnp.sum(stats1[:, 0, :], axis=0) / m
    var1 = jnp.sum(stats1[:, 1, :], axis=0) / m - mean1 * mean1        # biased batch variance
    s1 = prep["gamma1"] * jax.lax.rsqrt(var1 + EPS)
    t1 = prep["beta1"] - mean1 * s1

    y, stats2 = pallas_conv1(pooled, s1[None, :], t1[None, :], prep["w1p"])

    mean2 = jnp.sum(stats2[:, 0, :], axis=0) / m
    var2 = jnp.sum(stats2[:, 1, :], axis=0) / m - mean2 * mean2
    s2 = prep["gamma2v"] * jax.lax.rsqrt(var2 + EPS)
    t2 = prep["beta2v"] - mean2 * s2

    out_pad = pallas_conv2(y, s2[None, :], t2[None, :], prep["w2p"],
                           cout=Cout, c1_off=c1_off,
                           shortcut=pooled if identity else None)

    out = out_pad[..., :Cout]
    return jnp.transpose(out, (0, 3, 1, 2))                            # NHWC -> NCHW


# ---------------------------------------------------------------------------
# Pure-JAX reference (mirrors the PyTorch Down forward, training-mode BN, f32)
# ---------------------------------------------------------------------------
def down_reference(x, raw, in_channels, out_channels):
    xp = jax.lax.reduce_window(x, -jnp.inf, jax.lax.max,
                               (1, 1, 2, 2), (1, 1, 2, 2), "VALID")

    def bn(v, g, b):
        mu = jnp.mean(v, axis=(0, 2, 3), keepdims=True)
        var = jnp.mean((v - mu) ** 2, axis=(0, 2, 3), keepdims=True)
        return (g.reshape(1, -1, 1, 1) * (v - mu) * jax.lax.rsqrt(var + EPS)
                + b.reshape(1, -1, 1, 1))

    def conv(v, w):
        return jax.lax.conv_general_dilated(
            v, w, window_strides=(1, 1), padding=((1, 1), (1, 1)),
            dimension_numbers=("NCHW", "OIHW", "NCHW"),
            precision=jax.lax.Precision.HIGHEST)

    a = jnp.maximum(bn(xp, raw["gamma1"], raw["beta1"]), 0.0)
    shortcut = xp if in_channels == out_channels else conv(a, raw["w_proj"])
    v = conv(a, raw["w_conv1"])
    v = jnp.maximum(bn(v, raw["gamma2"], raw["beta2"]), 0.0)
    v = conv(v, raw["w_conv2"])
    return shortcut + v


# ---------------------------------------------------------------------------
# Main
# ---------------------------------------------------------------------------
if __name__ == "__main__":
    in_channels, out_channels = 4, 8
    N, H, W = 2, 16, 16

    key = jax.random.PRNGKey(0)
    ks = jax.random.split(key, 8)
    x = jax.random.normal(ks[0], (N, in_channels, H, W), jnp.float32)

    raw = {
        "w_proj": 0.1 * jax.random.normal(ks[1], (out_channels, in_channels, 3, 3), jnp.float32),
        "w_conv1": 0.1 * jax.random.normal(ks[2], (out_channels, in_channels, 3, 3), jnp.float32),
        "w_conv2": 0.1 * jax.random.normal(ks[3], (out_channels, out_channels, 3, 3), jnp.float32),
        "gamma1": 1.0 + 0.1 * jax.random.normal(ks[4], (in_channels,), jnp.float32),
        "beta1": 0.1 * jax.random.normal(ks[5], (in_channels,), jnp.float32),
        "gamma2": 1.0 + 0.1 * jax.random.normal(ks[6], (out_channels,), jnp.float32),
        "beta2": 0.1 * jax.random.normal(ks[7], (out_channels,), jnp.float32),
    }

    prep = prepare_params(raw, in_channels, out_channels)   # packed once, outside the forward

    fwd = jax.jit(functools.partial(
        down_forward, in_channels=in_channels, out_channels=out_channels))
    out = jax.block_until_ready(fwd(x, prep))

    ref = down_reference(x, raw, in_channels, out_channels)
    assert out.shape == (N, out_channels, H // 2, W // 2)
    max_err = float(jnp.max(jnp.abs(out - ref)))
    # bf16 MXU operands / bf16 inter-kernel intermediate with f32 accumulation and f32 BN
    # statistics -> a couple of 1e-2 of absolute error vs the f32 HIGHEST-precision reference.
    assert jnp.allclose(out, ref, atol=2e-2, rtol=2e-2), (
        f"mismatch vs reference, max abs diff = {max_err}")

    print("KERNEL_OK")
</pallas_src>

<mosaic_0001>
module attributes {stable_mosaic.version = 11 : i64} {
  func.func @pool_stats_kernel(%arg0: i32, %arg1: memref<1x8x2x8x8xf32, #tpu.memory_space<vmem>>, %arg2: memref<1x8x8x4xf32, #tpu.memory_space<vmem>>, %arg3: memref<1x2x4xf32, #tpu.memory_space<vmem>>) attributes {dimension_semantics = [#tpu.dimension_semantics<parallel>], iteration_bounds = array<i64: 2>, scalar_prefetch = 0 : i64, scratch_operands = 0 : i64, tpu.core_type = #tpu.core_type<tc>, window_params = [{transform_indices = @transform_0, window_bounds = array<i64: 1, 8, 2, 8, 8>}, {transform_indices = @transform_1, window_bounds = array<i64: 1, 8, 8, 4>}, {transform_indices = @transform_2, window_bounds = array<i64: 1, 2, 4>}]} {
    %c0 = arith.constant 0 : index
    %c0_0 = arith.constant 0 : index
    %c0_1 = arith.constant 0 : index
    %c0_2 = arith.constant 0 : index
    %c0_3 = arith.constant 0 : index
    %0 = vector.load %arg1[%c0, %c0_0, %c0_1, %c0_2, %c0_3] : memref<1x8x2x8x8xf32, #tpu.memory_space<vmem>>, vector<1x8x1x8x8xf32>
    %1 = vector.shape_cast %0 : vector<1x8x1x8x8xf32> to vector<8x8x8xf32>
    %c0_4 = arith.constant 0 : index
    %c0_5 = arith.constant 0 : index
    %c1 = arith.constant 1 : index
    %c0_6 = arith.constant 0 : index
    %c0_7 = arith.constant 0 : index
    %2 = vector.load %arg1[%c0_4, %c0_5, %c1, %c0_6, %c0_7] : memref<1x8x2x8x8xf32, #tpu.memory_space<vmem>>, vector<1x8x1x8x8xf32>
    %3 = vector.shape_cast %2 : vector<1x8x1x8x8xf32> to vector<8x8x8xf32>
    %4 = arith.maximumf %1, %3 : vector<8x8x8xf32>
    %5 = vector.extract_strided_slice %4 {offsets = [0, 0, 0], sizes = [8, 8, 4], strides = [1, 1, 1]} : vector<8x8x8xf32> to vector<8x8x4xf32>
    %6 = vector.extract_strided_slice %4 {offsets = [0, 0, 4], sizes = [8, 8, 4], strides = [1, 1, 1]} : vector<8x8x8xf32> to vector<8x8x4xf32>
    %7 = arith.maximumf %5, %6 : vector<8x8x4xf32>
    %c0_8 = arith.constant 0 : index
    %c0_9 = arith.constant 0 : index
    %c0_10 = arith.constant 0 : index
    %c0_11 = arith.constant 0 : index
    %8 = vector.load %arg2[%c0_8, %c0_9, %c0_10, %c0_11] : memref<1x8x8x4xf32, #tpu.memory_space<vmem>>, vector<1x8x8x4xf32>
    %9 = vector.shape_cast %8 : vector<1x8x8x4xf32> to vector<8x8x4xf32>
    %10 = vector.shape_cast %7 : vector<8x8x4xf32> to vector<1x8x8x4xf32>
    tpu.vector_store %arg2[%c0_8, %c0_9, %c0_10, %c0_11], %10 {strides = array<i32>} : memref<1x8x8x4xf32, #tpu.memory_space<vmem>>, vector<1x8x8x4xf32>,
    %cst = arith.constant dense<0.000000e+00> : vector<8x4xf32>
    %11 = vector.multi_reduction <add>, %7, %cst [0] : vector<8x8x4xf32> to vector<8x4xf32>
    %12 = arith.mulf %7, %7 : vector<8x8x4xf32>
    %cst_12 = arith.constant dense<0.000000e+00> : vector<8x4xf32>
    %13 = vector.multi_reduction <add>, %12, %cst_12 [0] : vector<8x8x4xf32> to vector<8x4xf32>
    %cst_13 = arith.constant dense<0.000000e+00> : vector<4xf32>
    %14 = vector.multi_reduction <add>, %11, %cst_13 [0] : vector<8x4xf32> to vector<4xf32>
    %15 = vector.shape_cast %14 : vector<4xf32> to vector<1x4xf32>
    %c0_14 = arith.constant 0 : index
    %c0_15 = arith.constant 0 : index
    %c0_16 = arith.constant 0 : index
    %16 = vector.load %arg3[%c0_14, %c0_15, %c0_16] : memref<1x2x4xf32, #tpu.memory_space<vmem>>, vector<1x1x4xf32>
    %17 = vector.shape_cast %16 : vector<1x1x4xf32> to vector<1x4xf32>
    %18 = vector.shape_cast %15 : vector<1x4xf32> to vector<1x1x4xf32>
    tpu.vector_store %arg3[%c0_14, %c0_15, %c0_16], %18 {strides = array<i32>} : memref<1x2x4xf32, #tpu.memory_space<vmem>>, vector<1x1x4xf32>,
    %cst_17 = arith.constant dense<0.000000e+00> : vector<4xf32>
    %19 = vector.multi_reduction <add>, %13, %cst_17 [0] : vector<8x4xf32> to vector<4xf32>
    %20 = vector.shape_cast %19 : vector<4xf32> to vector<1x4xf32>
    %c0_18 = arith.constant 0 : index
    %c1_19 = arith.constant 1 : index
    %c0_20 = arith.constant 0 : index
    %21 = vector.load %arg3[%c0_18, %c1_19, %c0_20] : memref<1x2x4xf32, #tpu.memory_space<vmem>>, vector<1x1x4xf32>
    %22 = vector.shape_cast %21 : vector<1x1x4xf32> to vector<1x4xf32>
    %23 = vector.shape_cast %20 : vector<1x4xf32> to vector<1x1x4xf32>
    tpu.vector_store %arg3[%c0_18, %c1_19, %c0_20], %23 {strides = array<i32>} : memref<1x2x4xf32, #tpu.memory_space<vmem>>, vector<1x1x4xf32>,
    return
  }
  func.func @transform_0(%arg0: i32) -> (i32, i32, i32, i32, i32) {
    %c0_i32 = arith.constant 0 : i32
    %c0_i32_0 = arith.constant 0 : i32
    %c0_i32_1 = arith.constant 0 : i32
    %c0_i32_2 = arith.constant 0 : i32
    %c0_i32_3 = arith.constant 0 : i32
    return %arg0, %c0_i32, %c0_i32_0, %c0_i32_1, %c0_i32_2 : i32, i32, i32, i32, i32
  }
  func.func @transform_1(%arg0: i32) -> (i32, i32, i32, i32) {
    %c0_i32 = arith.constant 0 : i32
    %c0_i32_0 = arith.constant 0 : i32
    %c0_i32_1 = arith.constant 0 : i32
    %c0_i32_2 = arith.constant 0 : i32
    return %arg0, %c0_i32, %c0_i32_0, %c0_i32_1 : i32, i32, i32, i32
  }
  func.func @transform_2(%arg0: i32) -> (i32, i32, i32) {
    %c0_i32 = arith.constant 0 : i32
    %c0_i32_0 = arith.constant 0 : i32
    %c0_i32_1 = arith.constant 0 : i32
    return %arg0, %c0_i32, %c0_i32_0 : i32, i32, i32
  }
}

module attributes {stable_mosaic.version = 11 : i64} {
  func.func @conv1_kernel(%arg0: i32, %arg1: memref<1x8x8x4xf32, #tpu.memory_space<vmem>>, %arg2: memref<1x4xf32, #tpu.memory_space<vmem>>, %arg3: memref<1x4xf32, #tpu.memory_space<vmem>>, %arg4: memref<128x128xbf16, #tpu.memory_space<vmem>>, %arg5: memref<1x8x8x128xbf16, #tpu.memory_space<vmem>>, %arg6: memref<1x2x128xf32, #tpu.memory_space<vmem>>, %arg7: memref<10x10x4xf32, #tpu.memory_space<vmem>>, %arg8: memref<8x8x128xf32, #tpu.memory_space<vmem>>) attributes {dimension_semantics = [#tpu.dimension_semantics<arbitrary>], iteration_bounds = array<i64: 2>, scalar_prefetch = 0 : i64, scratch_operands = 2 : i64, tpu.core_type = #tpu.core_type<tc>, window_params = [{transform_indices = @transform_0, window_bounds = array<i64: 1, 8, 8, 4>}, {pipeline_mode = #tpu.pipeline_mode<synchronous>, transform_indices = @transform_1, window_bounds = array<i64: 1, 4>}, {pipeline_mode = #tpu.pipeline_mode<synchronous>, transform_indices = @transform_2, window_bounds = array<i64: 1, 4>}, {pipeline_mode = #tpu.pipeline_mode<synchronous>, transform_indices = @transform_3, window_bounds = array<i64: 128, 128>}, {transform_indices = @transform_4, window_bounds = array<i64: 1, 8, 8, 128>}, {transform_indices = @transform_5, window_bounds = array<i64: 1, 2, 128>}]} {
    %c0_i32 = arith.constant 0 : i32
    %0 = arith.cmpi eq, %arg0, %c0_i32 : i32
    %1 = arith.extui %0 : i1 to i32
    %c0_i32_0 = arith.constant 0 : i32
    %2 = arith.cmpi ne, %1, %c0_i32_0 : i32
    scf.if %2 {
      %cst_73 = arith.constant 0.000000e+00 : f32
      %57 = vector.broadcast %cst_73 : f32 to vector<10x10x4xf32>
      %c0_74 = arith.constant 0 : index
      %c0_75 = arith.constant 0 : index
      %c0_76 = arith.constant 0 : index
      %58 = vector.load %arg7[%c0_74, %c0_75, %c0_76] : memref<10x10x4xf32, #tpu.memory_space<vmem>>, vector<10x10x4xf32>
      tpu.vector_store %arg7[%c0_74, %c0_75, %c0_76], %57 {strides = array<i32>} : memref<10x10x4xf32, #tpu.memory_space<vmem>>, vector<10x10x4xf32>,
      %cst_77 = arith.constant 0.000000e+00 : f32
      %59 = vector.broadcast %cst_77 : f32 to vector<8x8x128xf32>
      %c0_78 = arith.constant 0 : index
      %c0_79 = arith.constant 0 : index
      %c0_80 = arith.constant 0 : index
      %60 = vector.load %arg8[%c0_78, %c0_79, %c0_80] : memref<8x8x128xf32, #tpu.memory_space<vmem>>, vector<8x8x128xf32>
      tpu.vector_store %arg8[%c0_78, %c0_79, %c0_80], %59 {strides = array<i32>} : memref<8x8x128xf32, #tpu.memory_space<vmem>>, vector<8x8x128xf32>,
    } else {
    }
    %c0 = arith.constant 0 : index
    %c0_1 = arith.constant 0 : index
    %c0_2 = arith.constant 0 : index
    %c0_3 = arith.constant 0 : index
    %3 = vector.load %arg1[%c0, %c0_1, %c0_2, %c0_3] : memref<1x8x8x4xf32, #tpu.memory_space<vmem>>, vector<1x8x8x4xf32>
    %4 = vector.shape_cast %3 : vector<1x8x8x4xf32> to vector<8x8x4xf32>
    %c0_4 = arith.constant 0 : index
    %c0_5 = arith.constant 0 : index
    %5 = vector.load %arg2[%c0_4, %c0_5] : memref<1x4xf32, #tpu.memory_space<vmem>>, vector<1x4xf32>
    %6 = vector.shape_cast %5 : vector<1x4xf32> to vector<4xf32>
    %7 = vector.shape_cast %6 : vector<4xf32> to vector<1x1x4xf32>
    %8 = vector.broadcast %7 : vector<1x1x4xf32> to vector<8x8x4xf32>
    %9 = arith.mulf %4, %8 : vector<8x8x4xf32>
    %c0_6 = arith.constant 0 : index
    %c0_7 = arith.constant 0 : index
    %10 = vector.load %arg3[%c0_6, %c0_7] : memref<1x4xf32, #tpu.memory_space<vmem>>, vector<1x4xf32>
    %11 = vector.shape_cast %10 : vector<1x4xf32> to vector<4xf32>
    %12 = vector.shape_cast %11 : vector<4xf32> to vector<1x1x4xf32>
    %13 = vector.broadcast %12 : vector<1x1x4xf32> to vector<8x8x4xf32>
    %14 = arith.addf %9, %13 : vector<8x8x4xf32>
    %cst = arith.constant 0.000000e+00 : f32
    %15 = vector.broadcast %cst : f32 to vector<8x8x4xf32>
    %16 = arith.maximumf %14, %15 : vector<8x8x4xf32>
    %c1 = arith.constant 1 : index
    %c1_8 = arith.constant 1 : index
    %c0_9 = arith.constant 0 : index
    %17 = vector.load %arg7[%c1, %c1_8, %c0_9] : memref<10x10x4xf32, #tpu.memory_space<vmem>>, vector<8x8x4xf32>
    tpu.vector_store %arg7[%c1, %c1_8, %c0_9], %16 {strides = array<i32>} : memref<10x10x4xf32, #tpu.memory_space<vmem>>, vector<8x8x4xf32>,
    %c0_10 = arith.constant 0 : index
    %c0_11 = arith.constant 0 : index
    %c0_12 = arith.constant 0 : index
    %18 = vector.load %arg7[%c0_10, %c0_11, %c0_12] : memref<10x10x4xf32, #tpu.memory_space<vmem>>, vector<8x8x4xf32>
    %c0_13 = arith.constant 0 : index
    %c0_14 = arith.constant 0 : index
    %c0_15 = arith.constant 0 : index
    %19 = vector.load %arg8[%c0_13, %c0_14, %c0_15] : memref<8x8x128xf32, #tpu.memory_space<vmem>>, vector<8x8x4xf32>
    tpu.vector_store %arg8[%c0_13, %c0_14, %c0_15], %18 {strides = array<i32>} : memref<8x8x128xf32, #tpu.memory_space<vmem>>, vector<8x8x4xf32>,
    %c0_16 = arith.constant 0 : index
    %c1_17 = arith.constant 1 : index
    %c0_18 = arith.constant 0 : index
    %20 = vector.load %arg7[%c0_16, %c1_17, %c0_18] : memref<10x10x4xf32, #tpu.memory_space<vmem>>, vector<8x8x4xf32>
    %c0_19 = arith.constant 0 : index
    %c0_20 = arith.constant 0 : index
    %c4 = arith.constant 4 : index
    %21 = vector.load %arg8[%c0_19, %c0_20, %c4] : memref<8x8x128xf32, #tpu.memory_space<vmem>>, vector<8x8x4xf32>
    tpu.vector_store %arg8[%c0_19, %c0_20, %c4], %20 {strides = array<i32>} : memref<8x8x128xf32, #tpu.memory_space<vmem>>, vector<8x8x4xf32>,
    %c0_21 = arith.constant 0 : index
    %c2 = arith.constant 2 : index
    %c0_22 = arith.constant 0 : index
    %22 = vector.load %arg7[%c0_21, %c2, %c0_22] : memref<10x10x4xf32, #tpu.memory_space<vmem>>, vector<8x8x4xf32>
    %c0_23 = arith.constant 0 : index
    %c0_24 = arith.constant 0 : index
    %c8 = arith.constant 8 : index
    %23 = vector.load %arg8[%c0_23, %c0_24, %c8] : memref<8x8x128xf32, #tpu.memory_space<vmem>>, vector<8x8x4xf32>
    tpu.vector_store %arg8[%c0_23, %c0_24, %c8], %22 {strides = array<i32>} : memref<8x8x128xf32, #tpu.memory_space<vmem>>, vector<8x8x4xf32>,
    %c1_25 = arith.constant 1 : index
    %c0_26 = arith.constant 0 : index
    %c0_27 = arith.constant 0 : index
    %24 = vector.load %arg7[%c1_25, %c0_26, %c0_27] : memref<10x10x4xf32, #tpu.memory_space<vmem>>, vector<8x8x4xf32>
    %c0_28 = arith.constant 0 : index
    %c0_29 = arith.constant 0 : index
    %c12 = arith.constant 12 : index
    %25 = vector.load %arg8[%c0_28, %c0_29, %c12] : memref<8x8x128xf32, #tpu.memory_space<vmem>>, vector<8x8x4xf32>
    tpu.vector_store %arg8[%c0_28, %c0_29, %c12], %24 {strides = array<i32>} : memref<8x8x128xf32, #tpu.memory_space<vmem>>, vector<8x8x4xf32>,
    %c1_30 = arith.constant 1 : index
    %c1_31 = arith.constant 1 : index
    %c0_32 = arith.constant 0 : index
    %26 = vector.load %arg7[%c1_30, %c1_31, %c0_32] : memref<10x10x4xf32, #tpu.memory_space<vmem>>, vector<8x8x4xf32>
    %c0_33 = arith.constant 0 : index
    %c0_34 = arith.constant 0 : index
    %c16 = arith.constant 16 : index
    %27 = vector.load %arg8[%c0_33, %c0_34, %c16] : memref<8x8x128xf32, #tpu.memory_space<vmem>>, vector<8x8x4xf32>
    tpu.vector_store %arg8[%c0_33, %c0_34, %c16], %26 {strides = array<i32>} : memref<8x8x128xf32, #tpu.memory_space<vmem>>, vector<8x8x4xf32>,
    %c1_35 = arith.constant 1 : index
    %c2_36 = arith.constant 2 : index
    %c0_37 = arith.constant 0 : index
    %28 = vector.load %arg7[%c1_35, %c2_36, %c0_37] : memref<10x10x4xf32, #tpu.memory_space<vmem>>, vector<8x8x4xf32>
    %c0_38 = arith.constant 0 : index
    %c0_39 = arith.constant 0 : index
    %c20 = arith.constant 20 : index
    %29 = vector.load %arg8[%c0_38, %c0_39, %c20] : memref<8x8x128xf32, #tpu.memory_space<vmem>>, vector<8x8x4xf32>
    tpu.vector_store %arg8[%c0_38, %c0_39, %c20], %28 {strides = array<i32>} : memref<8x8x128xf32, #tpu.memory_space<vmem>>, vector<8x8x4xf32>,
    %c2_40 = arith.constant 2 : index
    %c0_41 = arith.constant 0 : index
    %c0_42 = arith.constant 0 : index
    %30 = vector.load %arg7[%c2_40, %c0_41, %c0_42] : memref<10x10x4xf32, #tpu.memory_space<vmem>>, vector<8x8x4xf32>
    %c0_43 = arith.constant 0 : index
    %c0_44 = arith.constant 0 : index
    %c24 = arith.constant 24 : index
    %31 = vector.load %arg8[%c0_43, %c0_44, %c24] : memref<8x8x128xf32, #tpu.memory_space<vmem>>, vector<8x8x4xf32>
    tpu.vector_store %arg8[%c0_43, %c0_44, %c24], %30 {strides = array<i32>} : memref<8x8x128xf32, #tpu.memory_space<vmem>>, vector<8x8x4xf32>,
    %c2_45 = arith.constant 2 : index
    %c1_46 = arith.constant 1 : index
    %c0_47 = arith.constant 0 : index
    %32 = vector.load %arg7[%c2_45, %c1_46, %c0_47] : memref<10x10x4xf32, #tpu.memory_space<vmem>>, vector<8x8x4xf32>
    %c0_48 = arith.constant 0 : index
    %c0_49 = arith.constant 0 : index
    %c28 = arith.constant 28 : index
    %33 = vector.load %arg8[%c0_48, %c0_49, %c28] : memref<8x8x128xf32, #tpu.memory_space<vmem>>, vector<8x8x4xf32>
    tpu.vector_store %arg8[%c0_48, %c0_49, %c28], %32 {strides = array<i32>} : memref<8x8x128xf32, #tpu.memory_space<vmem>>, vector<8x8x4xf32>,
    %c2_50 = arith.constant 2 : index
    %c2_51 = arith.constant 2 : index
    %c0_52 = arith.constant 0 : index
    %34 = vector.load %arg7[%c2_50, %c2_51, %c0_52] : memref<10x10x4xf32, #tpu.memory_space<vmem>>, vector<8x8x4xf32>
    %c0_53 = arith.constant 0 : index
    %c0_54 = arith.constant 0 : index
    %c32 = arith.constant 32 : index
    %35 = vector.load %arg8[%c0_53, %c0_54, %c32] : memref<8x8x128xf32, #tpu.memory_space<vmem>>, vector<8x8x4xf32>
    tpu.vector_store %arg8[%c0_53, %c0_54, %c32], %34 {strides = array<i32>} : memref<8x8x128xf32, #tpu.memory_space<vmem>>, vector<8x8x4xf32>,
    %c0_55 = arith.constant 0 : index
    %c0_56 = arith.constant 0 : index
    %c0_57 = arith.constant 0 : index
    %36 = vector.load %arg8[%c0_55, %c0_56, %c0_57] : memref<8x8x128xf32, #tpu.memory_space<vmem>>, vector<8x8x128xf32>
    %37 = vector.shape_cast %36 : vector<8x8x128xf32> to vector<64x128xf32>
    %38 = arith.truncf %37 : vector<64x128xf32> to vector<64x128xbf16>
    %c0_58 = arith.constant 0 : index
    %c0_59 = arith.constant 0 : index
    %39 = vector.load %arg4[%c0_58, %c0_59] : memref<128x128xbf16, #tpu.memory_space<vmem>>, vector<128x128xbf16>
    %cst_60 = arith.constant dense<0.000000e+00> : vector<64x128xf32>
    %40 = tpu.matmul %38, %39, %cst_60 {dimension_numbers = #tpu.dot_dimension_numbers<[1], [0], [0], [1], [0, 0, 1, 1], [], []>} : vector<64x128xbf16>, vector<128x128xbf16>, vector<64x128xf32> -> vector<64x128xf32>
    %41 = vector.shape_cast %40 : vector<64x128xf32> to vector<8x8x128xf32>
    %42 = arith.truncf %41 : vector<8x8x128xf32> to vector<8x8x128xbf16>
    %c0_61 = arith.constant 0 : index
    %c0_62 = arith.constant 0 : index
    %c0_63 = arith.constant 0 : index
    %c0_64 = arith.constant 0 : index
    %43 = vector.load %arg5[%c0_61, %c0_62, %c0_63, %c0_64] : memref<1x8x8x128xbf16, #tpu.memory_space<vmem>>, vector<1x8x8x128xbf16>
    %44 = vector.shape_cast %43 : vector<1x8x8x128xbf16> to vector<8x8x128xbf16>
    %45 = vector.shape_cast %42 : vector<8x8x128xbf16> to vector<1x8x8x128xbf16>
    tpu.vector_store %arg5[%c0_61, %c0_62, %c0_63, %c0_64], %45 {strides = array<i32>} : memref<1x8x8x128xbf16, #tpu.memory_space<vmem>>, vector<1x8x8x128xbf16>,
    %cst_65 = arith.constant dense<0.000000e+00> : vector<128xf32>
    %46 = vector.multi_reduction <add>, %40, %cst_65 [0] : vector<64x128xf32> to vector<128xf32>
    %47 = vector.shape_cast %46 : vector<128xf32> to vector<1x128xf32>
    %c0_66 = arith.constant 0 : index
    %c0_67 = arith.constant 0 : index
    %c0_68 = arith.constant 0 : index
    %48 = vector.load %arg6[%c0_66, %c0_67, %c0_68] : memref<1x2x128xf32, #tpu.memory_space<vmem>>, vector<1x1x128xf32>
    %49 = vector.shape_cast %48 : vector<1x1x128xf32> to vector<1x128xf32>
    %50 = vector.shape_cast %47 : vector<1x128xf32> to vector<1x1x128xf32>
    tpu.vector_store %arg6[%c0_66, %c0_67, %c0_68], %50 {strides = array<i32>} : memref<1x2x128xf32, #tpu.memory_space<vmem>>, vector<1x1x128xf32>,
    %51 = arith.mulf %40, %40 : vector<64x128xf32>
    %cst_69 = arith.constant dense<0.000000e+00> : vector<128xf32>
    %52 = vector.multi_reduction <add>, %51, %cst_69 [0] : vector<64x128xf32> to vector<128xf32>
    %53 = vector.shape_cast %52 : vector<128xf32> to vector<1x128xf32>
    %c0_70 = arith.constant 0 : index
    %c1_71 = arith.constant 1 : index
    %c0_72 = arith.constant 0 : index
    %54 = vector.load %arg6[%c0_70, %c1_71, %c0_72] : memref<1x2x128xf32, #tpu.memory_space<vmem>>, vector<1x1x128xf32>
    %55 = vector.shape_cast %54 : vector<1x1x128xf32> to vector<1x128xf32>
    %56 = vector.shape_cast %53 : vector<1x128xf32> to vector<1x1x128xf32>
    tpu.vector_store %arg6[%c0_70, %c1_71, %c0_72], %56 {strides = array<i32>} : memref<1x2x128xf32, #tpu.memory_space<vmem>>, vector<1x1x128xf32>,
    return
  }
  func.func @transform_0(%arg0: i32) -> (i32, i32, i32, i32) {
    %c0_i32 = arith.constant 0 : i32
    %c0_i32_0 = arith.constant 0 : i32
    %c0_i32_1 = arith.constant 0 : i32
    %c0_i32_2 = arith.constant 0 : i32
    return %arg0, %c0_i32, %c0_i32_0, %c0_i32_1 : i32, i32, i32, i32
  }
  func.func @transform_1(%arg0: i32) -> (i32, i32) {
    %c0_i32 = arith.constant 0 : i32
    %c0_i32_0 = arith.constant 0 : i32
    %c0_i32_1 = arith.constant 0 : i32
    return %c0_i32, %c0_i32_0 : i32, i32
  }
  func.func @transform_2(%arg0: i32) -> (i32, i32) {
    %c0_i32 = arith.constant 0 : i32
    %c0_i32_0 = arith.constant 0 : i32
    %c0_i32_1 = arith.constant 0 : i32
    return %c0_i32, %c0_i32_0 : i32, i32
  }
  func.func @transform_3(%arg0: i32) -> (i32, i32) {
    %c0_i32 = arith.constant 0 : i32
    %c0_i32_0 = arith.constant 0 : i32
    %c0_i32_1 = arith.constant 0 : i32
    return %c0_i32, %c0_i32_0 : i32, i32
  }
  func.func @transform_4(%arg0: i32) -> (i32, i32, i32, i32) {
    %c0_i32 = arith.constant 0 : i32
    %c0_i32_0 = arith.constant 0 : i32
    %c0_i32_1 = arith.constant 0 : i32
    %c0_i32_2 = arith.constant 0 : i32
    return %arg0, %c0_i32, %c0_i32_0, %c0_i32_1 : i32, i32, i32, i32
  }
  func.func @transform_5(%arg0: i32) -> (i32, i32, i32) {
    %c0_i32 = arith.constant 0 : i32
    %c0_i32_0 = arith.constant 0 : i32
    %c0_i32_1 = arith.constant 0 : i32
    return %arg0, %c0_i32, %c0_i32_0 : i32, i32, i32
  }
}

module attributes {stable_mosaic.version = 11 : i64} {
  func.func @conv2_kernel(%arg0: i32, %arg1: memref<1x8x8x128xbf16, #tpu.memory_space<vmem>>, %arg2: memref<1x128xf32, #tpu.memory_space<vmem>>, %arg3: memref<1x128xf32, #tpu.memory_space<vmem>>, %arg4: memref<128x128xbf16, #tpu.memory_space<vmem>>, %arg5: memref<1x8x8x128xf32, #tpu.memory_space<vmem>>, %arg6: memref<10x10x8xf32, #tpu.memory_space<vmem>>, %arg7: memref<8x8x128xf32, #tpu.memory_space<vmem>>) attributes {dimension_semantics = [#tpu.dimension_semantics<arbitrary>], iteration_bounds = array<i64: 2>, scalar_prefetch = 0 : i64, scratch_operands = 2 : i64, tpu.core_type = #tpu.core_type<tc>, window_params = [{transform_indices = @transform_0, window_bounds = array<i64: 1, 8, 8, 128>}, {pipeline_mode = #tpu.pipeline_mode<synchronous>, transform_indices = @transform_1, window_bounds = array<i64: 1, 128>}, {pipeline_mode = #tpu.pipeline_mode<synchronous>, transform_indices = @transform_2, window_bounds = array<i64: 1, 128>}, {pipeline_mode = #tpu.pipeline_mode<synchronous>, transform_indices = @transform_3, window_bounds = array<i64: 128, 128>}, {transform_indices = @transform_4, window_bounds = array<i64: 1, 8, 8, 128>}]} {
    %c0_i32 = arith.constant 0 : i32
    %0 = arith.cmpi eq, %arg0, %c0_i32 : i32
    %1 = arith.extui %0 : i1 to i32
    %c0_i32_0 = arith.constant 0 : i32
    %2 = arith.cmpi ne, %1, %c0_i32_0 : i32
    scf.if %2 {
      %cst_69 = arith.constant 0.000000e+00 : f32
      %50 = vector.broadcast %cst_69 : f32 to vector<10x10x8xf32>
      %c0_70 = arith.constant 0 : index
      %c0_71 = arith.constant 0 : index
      %c0_72 = arith.constant 0 : index
      %51 = vector.load %arg6[%c0_70, %c0_71, %c0_72] : memref<10x10x8xf32, #tpu.memory_space<vmem>>, vector<10x10x8xf32>
      tpu.vector_store %arg6[%c0_70, %c0_71, %c0_72], %50 {strides = array<i32>} : memref<10x10x8xf32, #tpu.memory_space<vmem>>, vector<10x10x8xf32>,
      %cst_73 = arith.constant 0.000000e+00 : f32
      %52 = vector.broadcast %cst_73 : f32 to vector<8x8x128xf32>
      %c0_74 = arith.constant 0 : index
      %c0_75 = arith.constant 0 : index
      %c0_76 = arith.constant 0 : index
      %53 = vector.load %arg7[%c0_74, %c0_75, %c0_76] : memref<8x8x128xf32, #tpu.memory_space<vmem>>, vector<8x8x128xf32>
      tpu.vector_store %arg7[%c0_74, %c0_75, %c0_76], %52 {strides = array<i32>} : memref<8x8x128xf32, #tpu.memory_space<vmem>>, vector<8x8x128xf32>,
    } else {
    }
    %c0 = arith.constant 0 : index
    %c0_1 = arith.constant 0 : index
    %c0_2 = arith.constant 0 : index
    %c8 = arith.constant 8 : index
    %3 = vector.load %arg1[%c0, %c0_1, %c0_2, %c8] : memref<1x8x8x128xbf16, #tpu.memory_space<vmem>>, vector<1x8x8x8xbf16>
    %4 = vector.shape_cast %3 : vector<1x8x8x8xbf16> to vector<8x8x8xbf16>
    %5 = arith.extf %4 : vector<8x8x8xbf16> to vector<8x8x8xf32>
    %c0_3 = arith.constant 0 : index
    %c8_4 = arith.constant 8 : index
    %6 = vector.load %arg2[%c0_3, %c8_4] : memref<1x128xf32, #tpu.memory_space<vmem>>, vector<1x8xf32>
    %7 = vector.shape_cast %6 : vector<1x8xf32> to vector<8xf32>
    %c0_5 = arith.constant 0 : index
    %c8_6 = arith.constant 8 : index
    %8 = vector.load %arg3[%c0_5, %c8_6] : memref<1x128xf32, #tpu.memory_space<vmem>>, vector<1x8xf32>
    %9 = vector.shape_cast %8 : vector<1x8xf32> to vector<8xf32>
    %10 = vector.shape_cast %7 : vector<8xf32> to vector<1x1x8xf32>
    %11 = vector.broadcast %10 : vector<1x1x8xf32> to vector<8x8x8xf32>
    %12 = arith.mulf %5, %11 : vector<8x8x8xf32>
    %13 = vector.shape_cast %9 : vector<8xf32> to vector<1x1x8xf32>
    %14 = vector.broadcast %13 : vector<1x1x8xf32> to vector<8x8x8xf32>
    %15 = arith.addf %12, %14 : vector<8x8x8xf32>
    %cst = arith.constant 0.000000e+00 : f32
    %16 = vector.broadcast %cst : f32 to vector<8x8x8xf32>
    %17 = arith.maximumf %15, %16 : vector<8x8x8xf32>
    %c1 = arith.constant 1 : index
    %c1_7 = arith.constant 1 : index
    %c0_8 = arith.constant 0 : index
    %18 = vector.load %arg6[%c1, %c1_7, %c0_8] : memref<10x10x8xf32, #tpu.memory_space<vmem>>, vector<8x8x8xf32>
    tpu.vector_store %arg6[%c1, %c1_7, %c0_8], %17 {strides = array<i32>} : memref<10x10x8xf32, #tpu.memory_space<vmem>>, vector<8x8x8xf32>,
    %c0_9 = arith.constant 0 : index
    %c0_10 = arith.constant 0 : index
    %c0_11 = arith.constant 0 : index
    %19 = vector.load %arg6[%c0_9, %c0_10, %c0_11] : memref<10x10x8xf32, #tpu.memory_space<vmem>>, vector<8x8x8xf32>
    %c0_12 = arith.constant 0 : index
    %c0_13 = arith.constant 0 : index
    %c0_14 = arith.constant 0 : index
    %20 = vector.load %arg7[%c0_12, %c0_13, %c0_14] : memref<8x8x128xf32, #tpu.memory_space<vmem>>, vector<8x8x8xf32>
    tpu.vector_store %arg7[%c0_12, %c0_13, %c0_14], %19 {strides = array<i32>} : memref<8x8x128xf32, #tpu.memory_space<vmem>>, vector<8x8x8xf32>,
    %c0_15 = arith.constant 0 : index
    %c1_16 = arith.constant 1 : index
    %c0_17 = arith.constant 0 : index
    %21 = vector.load %arg6[%c0_15, %c1_16, %c0_17] : memref<10x10x8xf32, #tpu.memory_space<vmem>>, vector<8x8x8xf32>
    %c0_18 = arith.constant 0 : index
    %c0_19 = arith.constant 0 : index
    %c8_20 = arith.constant 8 : index
    %22 = vector.load %arg7[%c0_18, %c0_19, %c8_20] : memref<8x8x128xf32, #tpu.memory_space<vmem>>, vector<8x8x8xf32>
    tpu.vector_store %arg7[%c0_18, %c0_19, %c8_20], %21 {strides = array<i32>} : memref<8x8x128xf32, #tpu.memory_space<vmem>>, vector<8x8x8xf32>,
    %c0_21 = arith.constant 0 : index
    %c2 = arith.constant 2 : index
    %c0_22 = arith.constant 0 : index
    %23 = vector.load %arg6[%c0_21, %c2, %c0_22] : memref<10x10x8xf32, #tpu.memory_space<vmem>>, vector<8x8x8xf32>
    %c0_23 = arith.constant 0 : index
    %c0_24 = arith.constant 0 : index
    %c16 = arith.constant 16 : index
    %24 = vector.load %arg7[%c0_23, %c0_24, %c16] : memref<8x8x128xf32, #tpu.memory_space<vmem>>, vector<8x8x8xf32>
    tpu.vector_store %arg7[%c0_23, %c0_24, %c16], %23 {strides = array<i32>} : memref<8x8x128xf32, #tpu.memory_space<vmem>>, vector<8x8x8xf32>,
    %c1_25 = arith.constant 1 : index
    %c0_26 = arith.constant 0 : index
    %c0_27 = arith.constant 0 : index
    %25 = vector.load %arg6[%c1_25, %c0_26, %c0_27] : memref<10x10x8xf32, #tpu.memory_space<vmem>>, vector<8x8x8xf32>
    %c0_28 = arith.constant 0 : index
    %c0_29 = arith.constant 0 : index
    %c24 = arith.constant 24 : index
    %26 = vector.load %arg7[%c0_28, %c0_29, %c24] : memref<8x8x128xf32, #tpu.memory_space<vmem>>, vector<8x8x8xf32>
    tpu.vector_store %arg7[%c0_28, %c0_29, %c24], %25 {strides = array<i32>} : memref<8x8x128xf32, #tpu.memory_space<vmem>>, vector<8x8x8xf32>,
    %c1_30 = arith.constant 1 : index
    %c1_31 = arith.constant 1 : index
    %c0_32 = arith.constant 0 : index
    %27 = vector.load %arg6[%c1_30, %c1_31, %c0_32] : memref<10x10x8xf32, #tpu.memory_space<vmem>>, vector<8x8x8xf32>
    %c0_33 = arith.constant 0 : index
    %c0_34 = arith.constant 0 : index
    %c32 = arith.constant 32 : index
    %28 = vector.load %arg7[%c0_33, %c0_34, %c32] : memref<8x8x128xf32, #tpu.memory_space<vmem>>, vector<8x8x8xf32>
    tpu.vector_store %arg7[%c0_33, %c0_34, %c32], %27 {strides = array<i32>} : memref<8x8x128xf32, #tpu.memory_space<vmem>>, vector<8x8x8xf32>,
    %c1_35 = arith.constant 1 : index
    %c2_36 = arith.constant 2 : index
    %c0_37 = arith.constant 0 : index
    %29 = vector.load %arg6[%c1_35, %c2_36, %c0_37] : memref<10x10x8xf32, #tpu.memory_space<vmem>>, vector<8x8x8xf32>
    %c0_38 = arith.constant 0 : index
    %c0_39 = arith.constant 0 : index
    %c40 = arith.constant 40 : index
    %30 = vector.load %arg7[%c0_38, %c0_39, %c40] : memref<8x8x128xf32, #tpu.memory_space<vmem>>, vector<8x8x8xf32>
    tpu.vector_store %arg7[%c0_38, %c0_39, %c40], %29 {strides = array<i32>} : memref<8x8x128xf32, #tpu.memory_space<vmem>>, vector<8x8x8xf32>,
    %c2_40 = arith.constant 2 : index
    %c0_41 = arith.constant 0 : index
    %c0_42 = arith.constant 0 : index
    %31 = vector.load %arg6[%c2_40, %c0_41, %c0_42] : memref<10x10x8xf32, #tpu.memory_space<vmem>>, vector<8x8x8xf32>
    %c0_43 = arith.constant 0 : index
    %c0_44 = arith.constant 0 : index
    %c48 = arith.constant 48 : index
    %32 = vector.load %arg7[%c0_43, %c0_44, %c48] : memref<8x8x128xf32, #tpu.memory_space<vmem>>, vector<8x8x8xf32>
    tpu.vector_store %arg7[%c0_43, %c0_44, %c48], %31 {strides = array<i32>} : memref<8x8x128xf32, #tpu.memory_space<vmem>>, vector<8x8x8xf32>,
    %c2_45 = arith.constant 2 : index
    %c1_46 = arith.constant 1 : index
    %c0_47 = arith.constant 0 : index
    %33 = vector.load %arg6[%c2_45, %c1_46, %c0_47] : memref<10x10x8xf32, #tpu.memory_space<vmem>>, vector<8x8x8xf32>
    %c0_48 = arith.constant 0 : index
    %c0_49 = arith.constant 0 : index
    %c56 = arith.constant 56 : index
    %34 = vector.load %arg7[%c0_48, %c0_49, %c56] : memref<8x8x128xf32, #tpu.memory_space<vmem>>, vector<8x8x8xf32>
    tpu.vector_store %arg7[%c0_48, %c0_49, %c56], %33 {strides = array<i32>} : memref<8x8x128xf32, #tpu.memory_space<vmem>>, vector<8x8x8xf32>,
    %c2_50 = arith.constant 2 : index
    %c2_51 = arith.constant 2 : index
    %c0_52 = arith.constant 0 : index
    %35 = vector.load %arg6[%c2_50, %c2_51, %c0_52] : memref<10x10x8xf32, #tpu.memory_space<vmem>>, vector<8x8x8xf32>
    %c0_53 = arith.constant 0 : index
    %c0_54 = arith.constant 0 : index
    %c64 = arith.constant 64 : index
    %36 = vector.load %arg7[%c0_53, %c0_54, %c64] : memref<8x8x128xf32, #tpu.memory_space<vmem>>, vector<8x8x8xf32>
    tpu.vector_store %arg7[%c0_53, %c0_54, %c64], %35 {strides = array<i32>} : memref<8x8x128xf32, #tpu.memory_space<vmem>>, vector<8x8x8xf32>,
    %c0_55 = arith.constant 0 : index
    %c0_56 = arith.constant 0 : index
    %c0_57 = arith.constant 0 : index
    %37 = vector.load %arg7[%c0_55, %c0_56, %c0_57] : memref<8x8x128xf32, #tpu.memory_space<vmem>>, vector<8x8x128xf32>
    %38 = vector.shape_cast %37 : vector<8x8x128xf32> to vector<64x128xf32>
    %39 = arith.truncf %38 : vector<64x128xf32> to vector<64x128xbf16>
    %c0_58 = arith.constant 0 : index
    %c0_59 = arith.constant 0 : index
    %40 = vector.load %arg4[%c0_58, %c0_59] : memref<128x128xbf16, #tpu.memory_space<vmem>>, vector<128x128xbf16>
    %cst_60 = arith.constant dense<0.000000e+00> : vector<64x128xf32>
    %41 = tpu.matmul %39, %40, %cst_60 {dimension_numbers = #tpu.dot_dimension_numbers<[1], [0], [0], [1], [0, 0, 1, 1], [], []>} : vector<64x128xbf16>, vector<128x128xbf16>, vector<64x128xf32> -> vector<64x128xf32>
    %42 = vector.shape_cast %41 : vector<64x128xf32> to vector<8x8x128xf32>
    %c0_61 = arith.constant 0 : index
    %c0_62 = arith.constant 0 : index
    %c0_63 = arith.constant 0 : index
    %c0_64 = arith.constant 0 : index
    %43 = vector.load %arg1[%c0_61, %c0_62, %c0_63, %c0_64] : memref<1x8x8x128xbf16, #tpu.memory_space<vmem>>, vector<1x8x8x128xbf16>
    %44 = vector.shape_cast %43 : vector<1x8x8x128xbf16> to vector<8x8x128xbf16>
    %45 = arith.extf %44 : vector<8x8x128xbf16> to vector<8x8x128xf32>
    %46 = arith.addf %42, %45 : vector<8x8x128xf32>
    %c0_65 = arith.constant 0 : index
    %c0_66 = arith.constant 0 : index
    %c0_67 = arith.constant 0 : index
    %c0_68 = arith.constant 0 : index
    %47 = vector.load %arg5[%c0_65, %c0_66, %c0_67, %c0_68] : memref<1x8x8x128xf32, #tpu.memory_space<vmem>>, vector<1x8x8x128xf32>
    %48 = vector.shape_cast %47 : vector<1x8x8x128xf32> to vector<8x8x128xf32>
    %49 = vector.shape_cast %46 : vector<8x8x128xf32> to vector<1x8x8x128xf32>
    tpu.vector_store %arg5[%c0_65, %c0_66, %c0_67, %c0_68], %49 {strides = array<i32>} : memref<1x8x8x128xf32, #tpu.memory_space<vmem>>, vector<1x8x8x128xf32>,
    return
  }
  func.func @transform_0(%arg0: i32) -> (i32, i32, i32, i32) {
    %c0_i32 = arith.constant 0 : i32
    %c0_i32_0 = arith.constant 0 : i32
    %c0_i32_1 = arith.constant 0 : i32
    %c0_i32_2 = arith.constant 0 : i32
    return %arg0, %c0_i32, %c0_i32_0, %c0_i32_1 : i32, i32, i32, i32
  }
  func.func @transform_1(%arg0: i32) -> (i32, i32) {
    %c0_i32 = arith.constant 0 : i32
    %c0_i32_0 = arith.constant 0 : i32
    %c0_i32_1 = arith.constant 0 : i32
    return %c0_i32, %c0_i32_0 : i32, i32
  }
  func.func @transform_2(%arg0: i32) -> (i32, i32) {
    %c0_i32 = arith.constant 0 : i32
    %c0_i32_0 = arith.constant 0 : i32
    %c0_i32_1 = arith.constant 0 : i32
    return %c0_i32, %c0_i32_0 : i32, i32
  }
  func.func @transform_3(%arg0: i32) -> (i32, i32) {
    %c0_i32 = arith.constant 0 : i32
    %c0_i32_0 = arith.constant 0 : i32
    %c0_i32_1 = arith.constant 0 : i32
    return %c0_i32, %c0_i32_0 : i32, i32
  }
  func.func @transform_4(%arg0: i32) -> (i32, i32, i32, i32) {
    %c0_i32 = arith.constant 0 : i32
    %c0_i32_0 = arith.constant 0 : i32
    %c0_i32_1 = arith.constant 0 : i32
    %c0_i32_2 = arith.constant 0 : i32
    return %arg0, %c0_i32, %c0_i32_0, %c0_i32_1 : i32, i32, i32, i32
  }
}

</mosaic_0001>

<llo_original>
// kernel: down_forward.3
$region0: #{down_forward.3}
  #allocation0 [shape = 'u32[]', space=smem, size = 0x4, offset = 0x4, fixed_abs, tag = 'smem constant byte address 0x4 - core index']
  #allocation1 [shape = 'u32[144,128]{1,0:T(1,128)}', space=vmem, size = 0x12000, scoped, tag = 'internal scratch']
  %s0 = inlined_call_operand.vmem [shape: f32[2,8,2,8,8], index: 0, kind: input, shape index: {}]
  %s1 = inlined_call_operand.vmem [shape: f32[2,8,8,4], index: 1, kind: output, shape index: {0}]
  %s2 = inlined_call_operand.vmem [shape: f32[2,2,4], index: 2, kind: output, shape index: {1}]
  %3 = xla_tuple %s1, %s2
  %s4 = sld [smem:[#allocation0]]
  $region45: #{down_forward.3} parent=0
    _
  %s6 = ssub.s32 1, %s4
  %s7 = scalar_select 0, %s6, %s4
  loop: start=0, step=1, limit=4
  $region2: #{down_forward.3} parent=0 // loop_pre_header
    _
  $region3: #{down_forward.3} parent=0 // loop_header
    %s9 = sphi 0, %s13
    %p10 = scmp.ge.s32.totalorder %s9, 4
    %s19 = sphi 0, %s21
    %s22 = sphi 0, %s19
    %s23 = sphi 0, %s22
    %s39 = sphi 0, %s23
    %s45 = sphi 0, %s47
    %s48 = sphi 0, %s45
    %s49 = sphi 0, %s48
    %s65 = sphi 0, %s49
    %s71 = sphi 0, %s73
    %s74 = sphi 0, %s71
    %s75 = sphi 0, %s74
    %s91 = sphi 0, %s75
  $region4: #{down_forward.3} parent=0 // loop_header_branch
    %12 = sbr.rel (%p10) target = $region8
  $region5: #{down_forward.3} parent=0 // loop_body
    %s14 = ssub.s32 %s9, 1
    %s15 = ssub.s32 %s9, 2
    %s16 = sadd.s32 %s9, 1
    %s17 = ssub.s32 %s9, %s16
    %p18 = scmp.eq.s32.totalorder %s17, 0
    %s20 = sadd.s32 %s19, 1
    %s21 = scalar_select %p18, %s19, %s20
    %p24 = pneg %p18
    %p25 = scmp.eq.s32.totalorder %s9, 1
    %p26 = por %p24, %p25
    %p27 = scmp.ne.s32.totalorder %s19, %s22
    %p28 = scmp.eq.s32.totalorder %s9, 0
    %p29 = por %p27, %p28
    %p30 = scmp.ne.s32.totalorder %s19, %s22
    %p31 = scmp.eq.s32.totalorder %s14, 1
    %p32 = por %p30, %p31
    %p33 = scmp.ne.s32.totalorder %s22, %s23
    %p34 = scmp.eq.s32.totalorder %s14, 0
    %p35 = por %p33, %p34
    %p36 = scmp.ne.s32.totalorder %s22, %s23
    %p37 = scmp.eq.s32.totalorder %s15, 1
    %p38 = por %p36, %p37
    %p40 = scmp.ne.s32.totalorder %s23, %s39
    %p41 = scmp.eq.s32.totalorder %s15, 0
    %p42 = por %p40, %p41
    %s43 = ssub.s32 %s9, %s16
    %p44 = scmp.eq.s32.totalorder %s43, 0
    %s46 = sadd.s32 %s45, 1
    %s47 = scalar_select %p44, %s45, %s46
    %p50 = pneg %p44
    %p51 = scmp.eq.s32.totalorder %s9, 1
    %p52 = por %p50, %p51
    %p53 = scmp.ne.s32.totalorder %s45, %s48
    %p54 = scmp.eq.s32.totalorder %s9, 0
    %p55 = por %p53, %p54
    %p56 = scmp.ne.s32.totalorder %s45, %s48
    %p57 = scmp.eq.s32.totalorder %s14, 1
    %p58 = por %p56, %p57
    %p59 = scmp.ne.s32.totalorder %s48, %s49
    %p60 = scmp.eq.s32.totalorder %s14, 0
    %p61 = por %p59, %p60
    %p62 = scmp.ne.s32.totalorder %s48, %s49
    %p63 = scmp.eq.s32.totalorder %s15, 1
    %p64 = por %p62, %p63
    %p66 = scmp.ne.s32.totalorder %s49, %s65
    %p67 = scmp.eq.s32.totalorder %s15, 0
    %p68 = por %p66, %p67
    %s69 = ssub.s32 %s9, %s16
    %p70 = scmp.eq.s32.totalorder %s69, 0
    %s72 = sadd.s32 %s71, 1
    %s73 = scalar_select %p70, %s71, %s72
    %p76 = pneg %p70
    %p77 = scmp.eq.s32.totalorder %s9, 1
    %p78 = por %p76, %p77
    %p79 = scmp.ne.s32.totalorder %s71, %s74
    %p80 = scmp.eq.s32.totalorder %s9, 0
    %p81 = por %p79, %p80
    %p82 = scmp.ne.s32.totalorder %s71, %s74
    %p83 = scmp.eq.s32.totalorder %s14, 1
    %p84 = por %p82, %p83
    %p85 = scmp.ne.s32.totalorder %s74, %s75
    %p86 = scmp.eq.s32.totalorder %s14, 0
    %p87 = por %p85, %p86
    %p88 = scmp.ne.s32.totalorder %s74, %s75
    %p89 = scmp.eq.s32.totalorder %s15, 1
    %p90 = por %p88, %p89
    %p92 = scmp.ne.s32.totalorder %s75, %s91
    %p93 = scmp.eq.s32.totalorder %s15, 0
    %p94 = por %p92, %p93
    %p95 = scmp.le.s32.totalorder 1, %s9
    %p96 = scmp.lt.s32.totalorder %s9, 3
    %p97 = pnand %p95, %p96
    %p98 = pneg %p97
    // Predicated region
    $region9: #{down_forward.3} parent=5 // pred_check
      _
    $region10: #{down_forward.3} parent=5 // pred_check_branch
      %100 = sbr.rel (%p97) target = $region12
    $region11: #{down_forward.3} parent=5 // pred_region
      %s101 = ssub.s32 %s9, 1
    $region12: #{down_forward.3} parent=5 // pred_fallthru
      _
    %p102 = scmp.lt.s32.totalorder %s9, 2
    // Predicated region
    $region13: #{down_forward.3} parent=5 // pred_check
      %p103 = pneg %p102
    $region14: #{down_forward.3} parent=5 // pred_check_branch
      %105 = sbr.rel (%p103) target = $region16
    $region15: #{down_forward.3} parent=5 // pred_region
      // Predicated region
      $region17: #{down_forward.3} parent=15 // pred_check
        %p106 = pneg %p29
      $region18: #{down_forward.3} parent=15 // pred_check_branch
        %108 = sbr.rel (%p106) target = $region20
      $region19: #{down_forward.3} parent=15 // pred_region
        %p109 = scmp.lt.s32.totalorder %s9, 1
        %s110 = scalar_select %p109, %s9, 1
        %s111 = smul.addr %s110, 16
        %s112 = smul.addr %s111, 8
        %s113 = scalar_lea.vmem %s0, %s112
      $region20: #{down_forward.3} parent=15 // pred_fallthru
        _
    $region16: #{down_forward.3} parent=5 // pred_fallthru
      _
    %p114 = scmp.le.s32.totalorder 1, %s9
    %p115 = scmp.lt.s32.totalorder %s9, 3
    %p116 = pnand %p114, %p115
    %p117 = pneg %p116
    // Predicated region
    $region21: #{down_forward.3} parent=5 // pred_check
      _
    $region22: #{down_forward.3} parent=5 // pred_check_branch
      %119 = sbr.rel (%p116) target = $region24
    $region23: #{down_forward.3} parent=5 // pred_region
      %s120 = ssub.s32 %s9, 1
      %p121 = scmp.lt.s32.totalorder %s14, 1
      %s122 = scalar_select %p121, %s14, 1
      %s123 = smul.addr %s122, 16
      %s124 = smul.addr %s123, 8
      %s125 = scalar_lea.vmem %s0, %s124
      %p126 = pneg %p35
      %p127 = pneg %p32
      %p128 = pneg %p61
      %p129 = pneg %p58
      %p130 = scmp.lt.s32.totalorder %s14, 1
      %s131 = scalar_select %p130, %s14, 1
      %s132 = smul.addr %s131, 8
      %s133 = smul.addr %s132, 8
      %s134 = scalar_lea.vmem %s1, %s133
      %p135 = pneg %p87
      %p136 = pneg %p84
      %p137 = scmp.lt.s32.totalorder %s14, 1
      %s138 = scalar_select %p137, %s14, 1
      %s139 = smul.addr %s138, 2
      %s140 = scalar_lea.vmem %s2, %s139
      %p141 = scmp.lt.s32.totalorder %s14, 1
      %s142 = scalar_select %p141, %s14, 1
      %s143 = smul.addr %s142, 16
      %s144 = smul.addr %s143, 8
      %s145 = scalar_lea.vmem %s0, %s144
      %p146 = scmp.lt.s32.totalorder %s14, 1
      %s147 = scalar_select %p146, %s14, 1
      %s148 = smul.addr %s147, 8
      %s149 = smul.addr %s148, 8
      %s150 = scalar_lea.vmem %s1, %s149
      %p151 = scmp.lt.s32.totalorder %s14, 1
      %s152 = scalar_select %p151, %s14, 1
      %s153 = smul.addr %s152, 2
      %s154 = scalar_lea.vmem %s2, %s153
      %v155 = vld [vmem:[%s145] sm:$0xff]
      %v156 = vld [vmem:[%s145 + $0x10] sm:$0xff]
      %v157 = vld [vmem:[%s145 + $0x20] sm:$0xff]
      %v158 = vld [vmem:[%s145 + $0x30] sm:$0xff]
      %v159 = vld [vmem:[%s145 + $0x40] sm:$0xff]
      %v160 = vld [vmem:[%s145 + $0x50] sm:$0xff]
      %v161 = vld [vmem:[%s145 + $0x60] sm:$0xff]
      %v162 = vld [vmem:[%s145 + $0x70] sm:$0xff]
      %s163 = scalar_lea.vmem %s145, 8
      %v164 = vld [vmem:[%s163] sm:$0xff]
      %v165 = vld [vmem:[%s163 + $0x10] sm:$0xff]
      %v166 = vld [vmem:[%s163 + $0x20] sm:$0xff]
      %v167 = vld [vmem:[%s163 + $0x30] sm:$0xff]
      %v168 = vld [vmem:[%s163 + $0x40] sm:$0xff]
      %v169 = vld [vmem:[%s163 + $0x50] sm:$0xff]
      %v170 = vld [vmem:[%s163 + $0x60] sm:$0xff]
      %v171 = vld [vmem:[%s163 + $0x70] sm:$0xff]
      %v172 = vmax.f32 %v155, %v164
      %v173 = vmax.f32 %v156, %v165
      %v174 = vmax.f32 %v157, %v166
      %v175 = vmax.f32 %v158, %v167
      %v176 = vmax.f32 %v159, %v168
      %v177 = vmax.f32 %v160, %v169
      %v178 = vmax.f32 %v161, %v170
      %v179 = vmax.f32 %v162, %v171
      %188 = vrot.lane.b32.xlu0 %v172, 124
      %v189 = vpop.permute.xlu0 %188
      %190 = vrot.lane.b32.xlu0 %v173, 124
      %v191 = vpop.permute.xlu0 %190
      %192 = vrot.lane.b32.xlu0 %v174, 124
      %v193 = vpop.permute.xlu0 %192
      %194 = vrot.lane.b32.xlu0 %v175, 124
      %v195 = vpop.permute.xlu0 %194
      %196 = vrot.lane.b32.xlu0 %v176, 124
      %v197 = vpop.permute.xlu0 %196
      %198 = vrot.lane.b32.xlu0 %v177, 124
      %v199 = vpop.permute.xlu0 %198
      %200 = vrot.lane.b32.xlu0 %v178, 124
      %v201 = vpop.permute.xlu0 %200
      %202 = vrot.lane.b32.xlu0 %v179, 124
      %v203 = vpop.permute.xlu0 %202
      %v212 = vmax.f32 %v172, %v189
      %v213 = vmax.f32 %v173, %v191
      %v214 = vmax.f32 %v174, %v193
      %v215 = vmax.f32 %v175, %v195
      %v216 = vmax.f32 %v176, %v197
      %v217 = vmax.f32 %v177, %v199
      %v218 = vmax.f32 %v178, %v201
      %v219 = vmax.f32 %v179, %v203
      %vm220 = vcmask 31744
      %221 = vst.msk [vmem:[%s150] sm:$0xff] %vm220, %v212
      %222 = vst.msk [vmem:[%s150 + $0x8] sm:$0xff] %vm220, %v213
      %223 = vst.msk [vmem:[%s150 + $0x10] sm:$0xff] %vm220, %v214
      %224 = vst.msk [vmem:[%s150 + $0x18] sm:$0xff] %vm220, %v215
      %225 = vst.msk [vmem:[%s150 + $0x20] sm:$0xff] %vm220, %v216
      %226 = vst.msk [vmem:[%s150 + $0x28] sm:$0xff] %vm220, %v217
      %227 = vst.msk [vmem:[%s150 + $0x30] sm:$0xff] %vm220, %v218
      %228 = vst.msk [vmem:[%s150 + $0x38] sm:$0xff] %vm220, %v219
      %v229 = vsel %vm220, %v212, 0.0
      %v230 = vsel %vm220, %v213, 0.0
      %v231 = vadd.f32 %v229, %v230
      %v232 = vsel %vm220, %v214, 0.0
      %v233 = vadd.f32 %v231, %v232
      %v234 = vsel %vm220, %v215, 0.0
      %v235 = vadd.f32 %v233, %v234
      %v236 = vsel %vm220, %v216, 0.0
      %v237 = vadd.f32 %v235, %v236
      %v238 = vsel %vm220, %v217, 0.0
      %v239 = vadd.f32 %v237, %v238
      %v240 = vsel %vm220, %v218, 0.0
      %v241 = vadd.f32 %v239, %v240
      %v242 = vsel %vm220, %v219, 0.0
      %v243 = vadd.f32 %v241, %v242
      %v244 = vmul.f32 %v212, %v212
      %v245 = vmul.f32 %v213, %v213
      %v246 = vmul.f32 %v214, %v214
      %v247 = vmul.f32 %v215, %v215
      %v248 = vmul.f32 %v216, %v216
      %v249 = vmul.f32 %v217, %v217
      %v250 = vmul.f32 %v218, %v218
      %v251 = vmul.f32 %v219, %v219
      %v252 = vsel %vm220, %v244, 0.0
      %v253 = vsel %vm220, %v245, 0.0
      %v254 = vadd.f32 %v252, %v253
      %v255 = vsel %vm220, %v246, 0.0
      %v256 = vadd.f32 %v254, %v255
      %v257 = vsel %vm220, %v247, 0.0
      %v258 = vadd.f32 %v256, %v257
      %v259 = vsel %vm220, %v248, 0.0
      %v260 = vadd.f32 %v258, %v259
      %v261 = vsel %vm220, %v249, 0.0
      %v262 = vadd.f32 %v260, %v261
      %v263 = vsel %vm220, %v250, 0.0
      %v264 = vadd.f32 %v262, %v263
      %v265 = vsel %vm220, %v251, 0.0
      %v266 = vadd.f32 %v264, %v265
      %v267 = vsel %vm220, %v243, 0.0
      %v268 = vrot.slane %v267, 4
      %v269 = vadd.f32 %v267, %v268
      %v270 = vrot.slane %v269, 2
      %v271 = vadd.f32 %v269, %v270
      %v272 = vrot.slane %v271, 1
      %v273 = vadd.f32 %v271, %v272
      %vm274 = vcmask 24576
      %275 = vst.msk [vmem:[%s154] sm:$0x1] %vm274, %v273
      %v276 = vsel %vm220, %v266, 0.0
      %v277 = vrot.slane %v276, 4
      %v278 = vadd.f32 %v276, %v277
      %v279 = vrot.slane %v278, 2
      %v280 = vadd.f32 %v278, %v279
      %v281 = vrot.slane %v280, 1
      %v282 = vadd.f32 %v280, %v281
      %283 = vst.msk [vmem:[%s154 + $0x1] sm:$0x1] %vm274, %v282
      %p284 = scmp.lt.s32.totalorder %s14, 1
      %s285 = scalar_select %p284, %s14, 1
      %s286 = smul.addr %s285, 8
      %s287 = smul.addr %s286, 8
      %s288 = scalar_lea.vmem %s1, %s287
      %p289 = scmp.lt.s32.totalorder %s14, 1
      %s290 = scalar_select %p289, %s14, 1
      %s291 = smul.addr %s290, 2
      %s292 = scalar_lea.vmem %s2, %s291
      // Predicated region
      $region25: #{down_forward.3} parent=23 // pred_check
        %p293 = pneg %p58
      $region26: #{down_forward.3} parent=23 // pred_check_branch
        %295 = sbr.rel (%p293) target = $region28
      $region27: #{down_forward.3} parent=23 // pred_region
        _
      $region28: #{down_forward.3} parent=23 // pred_fallthru
        _
      // Predicated region
      $region29: #{down_forward.3} parent=23 // pred_check
        %p296 = pneg %p84
      $region30: #{down_forward.3} parent=23 // pred_check_branch
        %298 = sbr.rel (%p296) target = $region32
      $region31: #{down_forward.3} parent=23 // pred_region
        _
      $region32: #{down_forward.3} parent=23 // pred_fallthru
        _
    $region24: #{down_forward.3} parent=5 // pred_fallthru
      _
    %p299 = scmp.le.s32.totalorder 2, %s9
    // Predicated region
    $region33: #{down_forward.3} parent=5 // pred_check
      %p300 = pneg %p299
    $region34: #{down_forward.3} parent=5 // pred_check_branch
      %302 = sbr.rel (%p300) target = $region36
    $region35: #{down_forward.3} parent=5 // pred_region
      %s303 = ssub.s32 %s9, 2
      // Predicated region
      $region37: #{down_forward.3} parent=35 // pred_check
        %p304 = pneg %p64
      $region38: #{down_forward.3} parent=35 // pred_check_branch
        %306 = sbr.rel (%p304) target = $region40
      $region39: #{down_forward.3} parent=35 // pred_region
        %p307 = scmp.lt.s32.totalorder %s15, 1
        %s308 = scalar_select %p307, %s15, 1
        %s309 = smul.addr %s308, 8
        %s310 = smul.addr %s309, 8
        %s311 = scalar_lea.vmem %s1, %s310
      $region40: #{down_forward.3} parent=35 // pred_fallthru
        _
      // Predicated region
      $region41: #{down_forward.3} parent=35 // pred_check
        %p312 = pneg %p90
      $region42: #{down_forward.3} parent=35 // pred_check_branch
        %314 = sbr.rel (%p312) target = $region44
      $region43: #{down_forward.3} parent=35 // pred_region
        %p315 = scmp.lt.s32.totalorder %s15, 1
        %s316 = scalar_select %p315, %s15, 1
        %s317 = smul.addr %s316, 2
        %s318 = scalar_lea.vmem %s2, %s317
      $region44: #{down_forward.3} parent=35 // pred_fallthru
        _
    $region36: #{down_forward.3} parent=5 // pred_fallthru
      _
  $region6: #{down_forward.3} parent=0 // loop_footer
    %s13 = sadd.s32 1, %s9
  $region7: #{down_forward.3} parent=0 // loop_footer_branch
    %8 = sbr.rel target = $region3
  $region8: #{down_forward.3} parent=0 // loop_exit
    _

// kernel: down_forward.4
$region0: #{down_forward.4}
  #allocation0 [shape = 'u32[]', space=smem, size = 0x4, offset = 0x4, fixed_abs, tag = 'smem constant byte address 0x4 - core index']
  #allocation1 [shape = 'u32[144,128]{1,0:T(1,128)}', space=vmem, size = 0x12000, scoped, tag = 'internal scratch']
  #allocation2 [shape = 'f32[10,10,4]{2,1,0:T(8,128)}', space=vmem, size = 0x14000, scoped, tag = 'scratch operand']
  #allocation3 [shape = 'f32[8,8,128]{2,1,0:T(8,128)}', space=vmem, size = 0x8000, scoped, tag = 'scratch operand']
  %s0 = inlined_call_operand.vmem [shape: f32[2,8,8,4], index: 0, kind: input, shape index: {}]
  %s1 = inlined_call_operand.vmem [shape: f32[1,4], index: 1, kind: input, shape index: {}]
  %s2 = inlined_call_operand.vmem [shape: f32[1,4], index: 2, kind: input, shape index: {}]
  %s3 = inlined_call_operand.vmem [shape: bf16[128,128], index: 3, kind: input, shape index: {}]
  %s4 = inlined_call_operand.vmem [shape: bf16[2,8,8,128], index: 4, kind: output, shape index: {0}]
  %s5 = inlined_call_operand.vmem [shape: f32[2,2,128], index: 5, kind: output, shape index: {1}]
  %6 = xla_tuple %s4, %s5
  %s7 = sld [smem:[#allocation0]]
  $region61: #{down_forward.4} parent=0
    _
  %s9 = ssub.s32 1, %s7
  %s10 = scalar_select 0, %s9, %s7
  loop: start=0, step=1, limit=4
  $region2: #{down_forward.4} parent=0 // loop_pre_header
    _
  $region3: #{down_forward.4} parent=0 // loop_header
    %s12 = sphi 0, %s16
    %p13 = scmp.ge.s32.totalorder %s12, 4
    %s22 = sphi 0, %s24
    %s25 = sphi 0, %s22
    %s26 = sphi 0, %s25
    %s42 = sphi 0, %s26
    %s46 = sphi 0, %s46
    %s48 = sphi 0, %s46
    %s49 = sphi 0, %s48
    %s63 = sphi 0, %s49
    %s67 = sphi 0, %s67
    %s69 = sphi 0, %s67
    %s70 = sphi 0, %s69
    %s84 = sphi 0, %s70
    %s88 = sphi 0, %s88
    %s90 = sphi 0, %s88
    %s91 = sphi 0, %s90
    %s105 = sphi 0, %s91
    %s111 = sphi 0, %s113
    %s114 = sphi 0, %s111
    %s115 = sphi 0, %s114
    %s131 = sphi 0, %s115
    %s137 = sphi 0, %s139
    %s140 = sphi 0, %s137
    %s141 = sphi 0, %s140
    %s157 = sphi 0, %s141
  $region4: #{down_forward.4} parent=0 // loop_header_branch
    %15 = sbr.rel (%p13) target = $region8
  $region5: #{down_forward.4} parent=0 // loop_body
    %s17 = ssub.s32 %s12, 1
    %s18 = ssub.s32 %s12, 2
    %s19 = sadd.s32 %s12, 1
    %s20 = ssub.s32 %s12, %s19
    %p21 = scmp.eq.s32.totalorder %s20, 0
    %s23 = sadd.s32 %s22, 1
    %s24 = scalar_select %p21, %s22, %s23
    %p27 = pneg %p21
    %p28 = scmp.eq.s32.totalorder %s12, 1
    %p29 = por %p27, %p28
    %p30 = scmp.ne.s32.totalorder %s22, %s25
    %p31 = scmp.eq.s32.totalorder %s12, 0
    %p32 = por %p30, %p31
    %p33 = scmp.ne.s32.totalorder %s22, %s25
    %p34 = scmp.eq.s32.totalorder %s17, 1
    %p35 = por %p33, %p34
    %p36 = scmp.ne.s32.totalorder %s25, %s26
    %p37 = scmp.eq.s32.totalorder %s17, 0
    %p38 = por %p36, %p37
    %p39 = scmp.ne.s32.totalorder %s25, %s26
    %p40 = scmp.eq.s32.totalorder %s18, 1
    %p41 = por %p39, %p40
    %p43 = scmp.ne.s32.totalorder %s26, %s42
    %p44 = scmp.eq.s32.totalorder %s18, 0
    %p45 = por %p43, %p44
    %s47 = sadd.s32 %s46, 1
    %p50 = scmp.eq.s32.totalorder %s12, 1
    %p51 = scmp.ne.s32.totalorder %s46, %s48
    %p52 = scmp.eq.s32.totalorder %s12, 0
    %p53 = por %p51, %p52
    %p54 = scmp.ne.s32.totalorder %s46, %s48
    %p55 = scmp.eq.s32.totalorder %s17, 1
    %p56 = por %p54, %p55
    %p57 = scmp.ne.s32.totalorder %s48, %s49
    %p58 = scmp.eq.s32.totalorder %s17, 0
    %p59 = por %p57, %p58
    %p60 = scmp.ne.s32.totalorder %s48, %s49
    %p61 = scmp.eq.s32.totalorder %s18, 1
    %p62 = por %p60, %p61
    %p64 = scmp.ne.s32.totalorder %s49, %s63
    %p65 = scmp.eq.s32.totalorder %s18, 0
    %p66 = por %p64, %p65
    %s68 = sadd.s32 %s67, 1
    %p71 = scmp.eq.s32.totalorder %s12, 1
    %p72 = scmp.ne.s32.totalorder %s67, %s69
    %p73 = scmp.eq.s32.totalorder %s12, 0
    %p74 = por %p72, %p73
    %p75 = scmp.ne.s32.totalorder %s67, %s69
    %p76 = scmp.eq.s32.totalorder %s17, 1
    %p77 = por %p75, %p76
    %p78 = scmp.ne.s32.totalorder %s69, %s70
    %p79 = scmp.eq.s32.totalorder %s17, 0
    %p80 = por %p78, %p79
    %p81 = scmp.ne.s32.totalorder %s69, %s70
    %p82 = scmp.eq.s32.totalorder %s18, 1
    %p83 = por %p81, %p82
    %p85 = scmp.ne.s32.totalorder %s70, %s84
    %p86 = scmp.eq.s32.totalorder %s18, 0
    %p87 = por %p85, %p86
    %s89 = sadd.s32 %s88, 1
    %p92 = scmp.eq.s32.totalorder %s12, 1
    %p93 = scmp.ne.s32.totalorder %s88, %s90
    %p94 = scmp.eq.s32.totalorder %s12, 0
    %p95 = por %p93, %p94
    %p96 = scmp.ne.s32.totalorder %s88, %s90
    %p97 = scmp.eq.s32.totalorder %s17, 1
    %p98 = por %p96, %p97
    %p99 = scmp.ne.s32.totalorder %s90, %s91
    %p100 = scmp.eq.s32.totalorder %s17, 0
    %p101 = por %p99, %p100
    %p102 = scmp.ne.s32.totalorder %s90, %s91
    %p103 = scmp.eq.s32.totalorder %s18, 1
    %p104 = por %p102, %p103
    %p106 = scmp.ne.s32.totalorder %s91, %s105
    %p107 = scmp.eq.s32.totalorder %s18, 0
    %p108 = por %p106, %p107
    %s109 = ssub.s32 %s12, %s19
    %p110 = scmp.eq.s32.totalorder %s109, 0
    %s112 = sadd.s32 %s111, 1
    %s113 = scalar_select %p110, %s111, %s112
    %p116 = pneg %p110
    %p117 = scmp.eq.s32.totalorder %s12, 1
    %p118 = por %p116, %p117
    %p119 = scmp.ne.s32.totalorder %s111, %s114
    %p120 = scmp.eq.s32.totalorder %s12, 0
    %p121 = por %p119, %p120
    %p122 = scmp.ne.s32.totalorder %s111, %s114
    %p123 = scmp.eq.s32.totalorder %s17, 1
    %p124 = por %p122, %p123
    %p125 = scmp.ne.s32.totalorder %s114, %s115
    %p126 = scmp.eq.s32.totalorder %s17, 0
    %p127 = por %p125, %p126
    %p128 = scmp.ne.s32.totalorder %s114, %s115
    %p129 = scmp.eq.s32.totalorder %s18, 1
    %p130 = por %p128, %p129
    %p132 = scmp.ne.s32.totalorder %s115, %s131
    %p133 = scmp.eq.s32.totalorder %s18, 0
    %p134 = por %p132, %p133
    %s135 = ssub.s32 %s12, %s19
    %p136 = scmp.eq.s32.totalorder %s135, 0
    %s138 = sadd.s32 %s137, 1
    %s139 = scalar_select %p136, %s137, %s138
    %p142 = pneg %p136
    %p143 = scmp.eq.s32.totalorder %s12, 1
    %p144 = por %p142, %p143
    %p145 = scmp.ne.s32.totalorder %s137, %s140
    %p146 = scmp.eq.s32.totalorder %s12, 0
    %p147 = por %p145, %p146
    %p148 = scmp.ne.s32.totalorder %s137, %s140
    %p149 = scmp.eq.s32.totalorder %s17, 1
    %p150 = por %p148, %p149
    %p151 = scmp.ne.s32.totalorder %s140, %s141
    %p152 = scmp.eq.s32.totalorder %s17, 0
    %p153 = por %p151, %p152
    %p154 = scmp.ne.s32.totalorder %s140, %s141
    %p155 = scmp.eq.s32.totalorder %s18, 1
    %p156 = por %p154, %p155
    %p158 = scmp.ne.s32.totalorder %s141, %s157
    %p159 = scmp.eq.s32.totalorder %s18, 0
    %p160 = por %p158, %p159
    %p161 = scmp.le.s32.totalorder 1, %s12
    %p162 = scmp.lt.s32.totalorder %s12, 3
    %p163 = pnand %p161, %p162
    %p164 = pneg %p163
    // Predicated region
    $region9: #{down_forward.4} parent=5 // pred_check
      _
    $region10: #{down_forward.4} parent=5 // pred_check_branch
      %166 = sbr.rel (%p163) target = $region12
    $region11: #{down_forward.4} parent=5 // pred_region
      %s167 = ssub.s32 %s12, 1
      // Predicated region
      $region13: #{down_forward.4} parent=11 // pred_check
        %p168 = pneg %p59
      $region14: #{down_forward.4} parent=11 // pred_check_branch
        %170 = sbr.rel (%p168) target = $region16
      $region15: #{down_forward.4} parent=11 // pred_region
        _
      $region16: #{down_forward.4} parent=11 // pred_fallthru
        _
      // Predicated region
      $region17: #{down_forward.4} parent=11 // pred_check
        %p171 = pneg %p80
      $region18: #{down_forward.4} parent=11 // pred_check_branch
        %173 = sbr.rel (%p171) target = $region20
      $region19: #{down_forward.4} parent=11 // pred_region
        _
      $region20: #{down_forward.4} parent=11 // pred_fallthru
        _
      // Predicated region
      $region21: #{down_forward.4} parent=11 // pred_check
        %p174 = pneg %p101
      $region22: #{down_forward.4} parent=11 // pred_check_branch
        %176 = sbr.rel (%p174) target = $region24
      $region23: #{down_forward.4} parent=11 // pred_region
        _
      $region24: #{down_forward.4} parent=11 // pred_fallthru
        _
    $region12: #{down_forward.4} parent=5 // pred_fallthru
      _
    %p177 = scmp.lt.s32.totalorder %s12, 2
    // Predicated region
    $region25: #{down_forward.4} parent=5 // pred_check
      %p178 = pneg %p177
    $region26: #{down_forward.4} parent=5 // pred_check_branch
      %180 = sbr.rel (%p178) target = $region28
    $region27: #{down_forward.4} parent=5 // pred_region
      // Predicated region
      $region29: #{down_forward.4} parent=27 // pred_check
        %p181 = pneg %p32
      $region30: #{down_forward.4} parent=27 // pred_check_branch
        %183 = sbr.rel (%p181) target = $region32
      $region31: #{down_forward.4} parent=27 // pred_region
        %p184 = scmp.lt.s32.totalorder %s12, 1
        %s185 = scalar_select %p184, %s12, 1
        %s186 = smul.addr %s185, 8
        %s187 = smul.addr %s186, 8
        %s188 = scalar_lea.vmem %s0, %s187
      $region32: #{down_forward.4} parent=27 // pred_fallthru
        _
    $region28: #{down_forward.4} parent=5 // pred_fallthru
      _
    %p189 = scmp.le.s32.totalorder 1, %s12
    %p190 = scmp.lt.s32.totalorder %s12, 3
    %p191 = pnand %p189, %p190
    %p192 = pneg %p191
    // Predicated region
    $region33: #{down_forward.4} parent=5 // pred_check
      _
    $region34: #{down_forward.4} parent=5 // pred_check_branch
      %194 = sbr.rel (%p191) target = $region36
    $region35: #{down_forward.4} parent=5 // pred_region
      %s195 = ssub.s32 %s12, 1
      %p196 = scmp.lt.s32.totalorder %s17, 1
      %s197 = scalar_select %p196, %s17, 1
      %s198 = smul.addr %s197, 8
      %s199 = smul.addr %s198, 8
      %s200 = scalar_lea.vmem %s0, %s199
      %p201 = pneg %p38
      %p202 = pneg %p35
      %p203 = pneg %p59
      %p204 = pneg %p56
      %p205 = pneg %p80
      %p206 = pneg %p77
      %p207 = pneg %p101
      %p208 = pneg %p98
      %p209 = pneg %p127
      %p210 = pneg %p124
      %p211 = scmp.lt.s32.totalorder %s17, 1
      %s212 = scalar_select %p211, %s17, 1
      %s213 = smul.addr %s212, 8
      %s214 = smul.addr %s213, 4
      %s215 = scalar_lea.vmem %s4, %s214
      %p216 = pneg %p153
      %p217 = pneg %p150
      %p218 = scmp.lt.s32.totalorder %s17, 1
      %s219 = scalar_select %p218, %s17, 1
      %s220 = smul.addr %s219, 2
      %s221 = scalar_lea.vmem %s5, %s220
      %p222 = scmp.lt.s32.totalorder %s17, 1
      %s223 = scalar_select %p222, %s17, 1
      %s224 = smul.addr %s223, 8
      %s225 = smul.addr %s224, 8
      %s226 = scalar_lea.vmem %s0, %s225
      %p227 = scmp.lt.s32.totalorder %s17, 1
      %s228 = scalar_select %p227, %s17, 1
      %s229 = smul.addr %s228, 8
      %s230 = smul.addr %s229, 4
      %s231 = scalar_lea.vmem %s4, %s230
      %p232 = scmp.lt.s32.totalorder %s17, 1
      %s233 = scalar_select %p232, %s17, 1
      %s234 = smul.addr %s233, 2
      %s235 = scalar_lea.vmem %s5, %s234
      %p237 = scmp.eq.s32.totalorder %s17, 0
      // Predicated region
      $region37: #{down_forward.4} parent=35 // pred_check
        %p238 = pneg %p237
      $region38: #{down_forward.4} parent=35 // pred_check_branch
        %240 = sbr.rel (%p238) target = $region40
      $region39: #{down_forward.4} parent=35 // pred_region
        %vm241 = vcmask 31744
        %242 = vst.msk [vmem:[#allocation2] sm:$0xff] %vm241, 0.0
        %vm243 = vcmask 25600
        %244 = vst.msk [vmem:[#allocation2 + $0x8] sm:$0x3] %vm243, 0.0
        %245 = vst.msk [vmem:[#allocation2 + $0x10] sm:$0xff] %vm241, 0.0
        %246 = vst.msk [vmem:[#allocation2 + $0x18] sm:$0x3] %vm243, 0.0
        %247 = vst.msk [vmem:[#allocation2 + $0x20] sm:$0xff] %vm241, 0.0
        %248 = vst.msk [vmem:[#allocation2 + $0x28] sm:$0x3] %vm243, 0.0
        %249 = vst.msk [vmem:[#allocation2 + $0x30] sm:$0xff] %vm241, 0.0
        %250 = vst.msk [vmem:[#allocation2 + $0x38] sm:$0x3] %vm243, 0.0
        %251 = vst.msk [vmem:[#allocation2 + $0x40] sm:$0xff] %vm241, 0.0
        %252 = vst.msk [vmem:[#allocation2 + $0x48] sm:$0x3] %vm243, 0.0
        %253 = vst.msk [vmem:[#allocation2 + $0x50] sm:$0xff] %vm241, 0.0
        %254 = vst.msk [vmem:[#allocation2 + $0x58] sm:$0x3] %vm243, 0.0
        %255 = vst.msk [vmem:[#allocation2 + $0x60] sm:$0xff] %vm241, 0.0
        %256 = vst.msk [vmem:[#allocation2 + $0x68] sm:$0x3] %vm243, 0.0
        %257 = vst.msk [vmem:[#allocation2 + $0x70] sm:$0xff] %vm241, 0.0
        %258 = vst.msk [vmem:[#allocation2 + $0x78] sm:$0x3] %vm243, 0.0
        %259 = vst.msk [vmem:[#allocation2 + $0x80] sm:$0xff] %vm241, 0.0
        %260 = vst.msk [vmem:[#allocation2 + $0x88] sm:$0x3] %vm243, 0.0
        %261 = vst.msk [vmem:[#allocation2 + $0x90] sm:$0xff] %vm241, 0.0
        %262 = vst.msk [vmem:[#allocation2 + $0x98] sm:$0x3] %vm243, 0.0
        %263 = vst [vmem:[#allocation3] sm:$0xff] 0.0
        %264 = vst [vmem:[#allocation3 + $0x8] sm:$0xff] 0.0
        %265 = vst [vmem:[#allocation3 + $0x10] sm:$0xff] 0.0
        %266 = vst [vmem:[#allocation3 + $0x18] sm:$0xff] 0.0
        %267 = vst [vmem:[#allocation3 + $0x20] sm:$0xff] 0.0
        %268 = vst [vmem:[#allocation3 + $0x28] sm:$0xff] 0.0
        %269 = vst [vmem:[#allocation3 + $0x30] sm:$0xff] 0.0
        %270 = vst [vmem:[#allocation3 + $0x38] sm:$0xff] 0.0
      $region40: #{down_forward.4} parent=35 // pred_fallthru
        _
      %v271 = vld [vmem:[%s226] sm:$0xff]
      %v272 = vld [vmem:[%s226 + $0x8] sm:$0xff]
      %v273 = vld [vmem:[%s226 + $0x10] sm:$0xff]
      %v274 = vld [vmem:[%s226 + $0x18] sm:$0xff]
      %v275 = vld [vmem:[%s226 + $0x20] sm:$0xff]
      %v276 = vld [vmem:[%s226 + $0x28] sm:$0xff]
      %v277 = vld [vmem:[%s226 + $0x30] sm:$0xff]
      %v278 = vld [vmem:[%s226 + $0x38] sm:$0xff]
      %v279 = vld [vmem:[%s1] sm:$0x1]
      %v281 = vlaneseq
      %v282 = vshrl.u32 %v281, 7
      %v283 = vsub.s32 0, %v282
      %v284 = vrot.slane %v279, %v283
      %v286 = vmul.f32 %v271, %v284
      %v287 = vmul.f32 %v272, %v284
      %v288 = vmul.f32 %v273, %v284
      %v289 = vmul.f32 %v274, %v284
      %v290 = vmul.f32 %v275, %v284
      %v291 = vmul.f32 %v276, %v284
      %v292 = vmul.f32 %v277, %v284
      %v293 = vmul.f32 %v278, %v284
      %v294 = vld [vmem:[%s2] sm:$0x1]
      %v296 = vlaneseq
      %v297 = vshrl.u32 %v296, 7
      %v298 = vsub.s32 0, %v297
      %v299 = vrot.slane %v294, %v298
      %v301 = vadd.f32 %v286, %v299
      %v302 = vadd.f32 %v287, %v299
      %v303 = vadd.f32 %v288, %v299
      %v304 = vadd.f32 %v289, %v299
      %v305 = vadd.f32 %v290, %v299
      %v306 = vadd.f32 %v291, %v299
      %v307 = vadd.f32 %v292, %v299
      %v308 = vadd.f32 %v293, %v299
      %v309 = vmax.f32 %v301, 0.0
      %v310 = vmax.f32 %v302, 0.0
      %v311 = vmax.f32 %v303, 0.0
      %v312 = vmax.f32 %v304, 0.0
      %v313 = vmax.f32 %v305, 0.0
      %v314 = vmax.f32 %v306, 0.0
      %v315 = vmax.f32 %v307, 0.0
      %v316 = vmax.f32 %v308, 0.0
      %s317 = scalar_lea.vmem [#allocation2], 16
      %vm318 = vcmask 31744
      %319 = vst.msk [vmem:[%s317 + $0x1] sm:$0xff] %vm318, %v309
      %320 = vst.msk [vmem:[%s317 + $0x11] sm:$0xff] %vm318, %v310
      %321 = vst.msk [vmem:[%s317 + $0x21] sm:$0xff] %vm318, %v311
      %322 = vst.msk [vmem:[%s317 + $0x31] sm:$0xff] %vm318, %v312
      %323 = vst.msk [vmem:[%s317 + $0x41] sm:$0xff] %vm318, %v313
      %324 = vst.msk [vmem:[%s317 + $0x51] sm:$0xff] %vm318, %v314
      %325 = vst.msk [vmem:[%s317 + $0x61] sm:$0xff] %vm318, %v315
      %326 = vst.msk [vmem:[%s317 + $0x71] sm:$0xff] %vm318, %v316
      %v327 = vld [vmem:[#allocation2] sm:$0xff]
      %v328 = vld [vmem:[#allocation2 + $0x10] sm:$0xff]
      %v329 = vld [vmem:[#allocation2 + $0x20] sm:$0xff]
      %v330 = vld [vmem:[#allocation2 + $0x30] sm:$0xff]
      %v331 = vld [vmem:[#allocation2 + $0x40] sm:$0xff]
      %v332 = vld [vmem:[#allocation2 + $0x50] sm:$0xff]
      %v333 = vld [vmem:[#allocation2 + $0x60] sm:$0xff]
      %v334 = vld [vmem:[#allocation2 + $0x70] sm:$0xff]
      %335 = vst.msk [vmem:[#allocation3] sm:$0xff] %vm318, %v327
      %336 = vst.msk [vmem:[#allocation3 + $0x8] sm:$0xff] %vm318, %v328
      %337 = vst.msk [vmem:[#allocation3 + $0x10] sm:$0xff] %vm318, %v329
      %338 = vst.msk [vmem:[#allocation3 + $0x18] sm:$0xff] %vm318, %v330
      %339 = vst.msk [vmem:[#allocation3 + $0x20] sm:$0xff] %vm318, %v331
      %340 = vst.msk [vmem:[#allocation3 + $0x28] sm:$0xff] %vm318, %v332
      %341 = vst.msk [vmem:[#allocation3 + $0x30] sm:$0xff] %vm318, %v333
      %342 = vst.msk [vmem:[#allocation3 + $0x38] sm:$0xff] %vm318, %v334
      %v343 = vld [vmem:[#allocation2 + $0x1] sm:$0xff]
      %v344 = vld [vmem:[#allocation2 + $0x11] sm:$0xff]
      %v345 = vld [vmem:[#allocation2 + $0x21] sm:$0xff]
      %v346 = vld [vmem:[#allocation2 + $0x31] sm:$0xff]
      %v347 = vld [vmem:[#allocation2 + $0x41] sm:$0xff]
      %v348 = vld [vmem:[#allocation2 + $0x51] sm:$0xff]
      %v349 = vld [vmem:[#allocation2 + $0x61] sm:$0xff]
      %v350 = vld [vmem:[#allocation2 + $0x71] sm:$0xff]
      %359 = vrot.lane.b32.xlu0 %v343, 4
      %v360 = vpop.permute.xlu0 %359
      %361 = vrot.lane.b32.xlu0 %v344, 4
      %v362 = vpop.permute.xlu0 %361
      %363 = vrot.lane.b32.xlu0 %v345, 4
      %v364 = vpop.permute.xlu0 %363
      %365 = vrot.lane.b32.xlu0 %v346, 4
      %v366 = vpop.permute.xlu0 %365
      %367 = vrot.lane.b32.xlu0 %v347, 4
      %v368 = vpop.permute.xlu0 %367
      %369 = vrot.lane.b32.xlu0 %v348, 4
      %v370 = vpop.permute.xlu0 %369
      %371 = vrot.lane.b32.xlu0 %v349, 4
      %v372 = vpop.permute.xlu0 %371
      %373 = vrot.lane.b32.xlu0 %v350, 4
      %v374 = vpop.permute.xlu0 %373
      %vm383 = vcmask 64544
      %384 = vst.msk [vmem:[#allocation3] sm:$0xff] %vm383, %v360
      %385 = vst.msk [vmem:[#allocation3 + $0x8] sm:$0xff] %vm383, %v362
      %386 = vst.msk [vmem:[#allocation3 + $0x10] sm:$0xff] %vm383, %v364
      %387 = vst.msk [vmem:[#allocation3 + $0x18] sm:$0xff] %vm383, %v366
      %388 = vst.msk [vmem:[#allocation3 + $0x20] sm:$0xff] %vm383, %v368
      %389 = vst.msk [vmem:[#allocation3 + $0x28] sm:$0xff] %vm383, %v370
      %390 = vst.msk [vmem:[#allocation3 + $0x30] sm:$0xff] %vm383, %v372
      %391 = vst.msk [vmem:[#allocation3 + $0x38] sm:$0xff] %vm383, %v374
      %v392 = vld [vmem:[#allocation2 + $0x2] sm:$0xff]
      %v393 = vld [vmem:[#allocation2 + $0x12] sm:$0xff]
      %v394 = vld [vmem:[#allocation2 + $0x22] sm:$0xff]
      %v395 = vld [vmem:[#allocation2 + $0x32] sm:$0xff]
      %v396 = vld [vmem:[#allocation2 + $0x42] sm:$0xff]
      %v397 = vld [vmem:[#allocation2 + $0x52] sm:$0xff]
      %v398 = vld [vmem:[#allocation2 + $0x62] sm:$0xff]
      %v399 = vld [vmem:[#allocation2 + $0x72] sm:$0xff]
      %408 = vrot.lane.b32.xlu0 %v392, 8
      %v409 = vpop.permute.xlu0 %408
      %410 = vrot.lane.b32.xlu0 %v393, 8
      %v411 = vpop.permute.xlu0 %410
      %412 = vrot.lane.b32.xlu0 %v394, 8
      %v413 = vpop.permute.xlu0 %412
      %414 = vrot.lane.b32.xlu0 %v395, 8
      %v415 = vpop.permute.xlu0 %414
      %416 = vrot.lane.b32.xlu0 %v396, 8
      %v417 = vpop.permute.xlu0 %416
      %418 = vrot.lane.b32.xlu0 %v397, 8
      %v419 = vpop.permute.xlu0 %418
      %420 = vrot.lane.b32.xlu0 %v398, 8
      %v421 = vpop.permute.xlu0 %420
      %422 = vrot.lane.b32.xlu0 %v399, 8
      %v423 = vpop.permute.xlu0 %422
      %vm432 = vcmask 97344
      %433 = vst.msk [vmem:[#allocation3] sm:$0xff] %vm432, %v409
      %434 = vst.msk [vmem:[#allocation3 + $0x8] sm:$0xff] %vm432, %v411
      %435 = vst.msk [vmem:[#allocation3 + $0x10] sm:$0xff] %vm432, %v413
      %436 = vst.msk [vmem:[#allocation3 + $0x18] sm:$0xff] %vm432, %v415
      %437 = vst.msk [vmem:[#allocation3 + $0x20] sm:$0xff] %vm432, %v417
      %438 = vst.msk [vmem:[#allocation3 + $0x28] sm:$0xff] %vm432, %v419
      %439 = vst.msk [vmem:[#allocation3 + $0x30] sm:$0xff] %vm432, %v421
      %440 = vst.msk [vmem:[#allocation3 + $0x38] sm:$0xff] %vm432, %v423
      %v441 = vld [vmem:[%s317] sm:$0xff]
      %v442 = vld [vmem:[%s317 + $0x10] sm:$0xff]
      %v443 = vld [vmem:[%s317 + $0x20] sm:$0xff]
      %v444 = vld [vmem:[%s317 + $0x30] sm:$0xff]
      %v445 = vld [vmem:[%s317 + $0x40] sm:$0xff]
      %v446 = vld [vmem:[%s317 + $0x50] sm:$0xff]
      %v447 = vld [vmem:[%s317 + $0x60] sm:$0xff]
      %v448 = vld [vmem:[%s317 + $0x70] sm:$0xff]
      %457 = vrot.lane.b32.xlu0 %v441, 12
      %v458 = vpop.permute.xlu0 %457
      %459 = vrot.lane.b32.xlu0 %v442, 12
      %v460 = vpop.permute.xlu0 %459
      %461 = vrot.lane.b32.xlu0 %v443, 12
      %v462 = vpop.permute.xlu0 %461
      %463 = vrot.lane.b32.xlu0 %v444, 12
      %v464 = vpop.permute.xlu0 %463
      %465 = vrot.lane.b32.xlu0 %v445, 12
      %v466 = vpop.permute.xlu0 %465
      %467 = vrot.lane.b32.xlu0 %v446, 12
      %v468 = vpop.permute.xlu0 %467
      %469 = vrot.lane.b32.xlu0 %v447, 12
      %v470 = vpop.permute.xlu0 %469
      %471 = vrot.lane.b32.xlu0 %v448, 12
      %v472 = vpop.permute.xlu0 %471
      %vm481 = vcmask 130144
      %482 = vst.msk [vmem:[#allocation3] sm:$0xff] %vm481, %v458
      %483 = vst.msk [vmem:[#allocation3 + $0x8] sm:$0xff] %vm481, %v460
      %484 = vst.msk [vmem:[#allocation3 + $0x10] sm:$0xff] %vm481, %v462
      %485 = vst.msk [vmem:[#allocation3 + $0x18] sm:$0xff] %vm481, %v464
      %486 = vst.msk [vmem:[#allocation3 + $0x20] sm:$0xff] %vm481, %v466
      %487 = vst.msk [vmem:[#allocation3 + $0x28] sm:$0xff] %vm481, %v468
      %488 = vst.msk [vmem:[#allocation3 + $0x30] sm:$0xff] %vm481, %v470
      %489 = vst.msk [vmem:[#allocation3 + $0x38] sm:$0xff] %vm481, %v472
      %v490 = vld [vmem:[%s317 + $0x1] sm:$0xff]
      %v491 = vld [vmem:[%s317 + $0x11] sm:$0xff]
      %v492 = vld [vmem:[%s317 + $0x21] sm:$0xff]
      %v493 = vld [vmem:[%s317 + $0x31] sm:$0xff]
      %v494 = vld [vmem:[%s317 + $0x41] sm:$0xff]
      %v495 = vld [vmem:[%s317 + $0x51] sm:$0xff]
      %v496 = vld [vmem:[%s317 + $0x61] sm:$0xff]
      %v497 = vld [vmem:[%s317 + $0x71] sm:$0xff]
      %506 = vrot.lane.b32.xlu0 %v490, 16
      %v507 = vpop.permute.xlu0 %506
      %508 = vrot.lane.b32.xlu0 %v491, 16
      %v509 = vpop.permute.xlu0 %508
      %510 = vrot.lane.b32.xlu0 %v492, 16
      %v511 = vpop.permute.xlu0 %510
      %512 = vrot.lane.b32.xlu0 %v493, 16
      %v513 = vpop.permute.xlu0 %512
      %514 = vrot.lane.b32.xlu0 %v494, 16
      %v515 = vpop.permute.xlu0 %514
      %516 = vrot.lane.b32.xlu0 %v495, 16
      %v517 = vpop.permute.xlu0 %516
      %518 = vrot.lane.b32.xlu0 %v496, 16
      %v519 = vpop.permute.xlu0 %518
      %520 = vrot.lane.b32.xlu0 %v497, 16
      %v521 = vpop.permute.xlu0 %520
      %vm530 = vcmask 162944
      %531 = vst.msk [vmem:[#allocation3] sm:$0xff] %vm530, %v507
      %532 = vst.msk [vmem:[#allocation3 + $0x8] sm:$0xff] %vm530, %v509
      %533 = vst.msk [vmem:[#allocation3 + $0x10] sm:$0xff] %vm530, %v511
      %534 = vst.msk [vmem:[#allocation3 + $0x18] sm:$0xff] %vm530, %v513
      %535 = vst.msk [vmem:[#allocation3 + $0x20] sm:$0xff] %vm530, %v515
      %536 = vst.msk [vmem:[#allocation3 + $0x28] sm:$0xff] %vm530, %v517
      %537 = vst.msk [vmem:[#allocation3 + $0x30] sm:$0xff] %vm530, %v519
      %538 = vst.msk [vmem:[#allocation3 + $0x38] sm:$0xff] %vm530, %v521
      %v539 = vld [vmem:[%s317 + $0x2] sm:$0xff]
      %v540 = vld [vmem:[%s317 + $0x12] sm:$0xff]
      %v541 = vld [vmem:[%s317 + $0x22] sm:$0xff]
      %v542 = vld [vmem:[%s317 + $0x32] sm:$0xff]
      %v543 = vld [vmem:[%s317 + $0x42] sm:$0xff]
      %v544 = vld [vmem:[%s317 + $0x52] sm:$0xff]
      %v545 = vld [vmem:[%s317 + $0x62] sm:$0xff]
      %v546 = vld [vmem:[%s317 + $0x72] sm:$0xff]
      %555 = vrot.lane.b32.xlu0 %v539, 20
      %v556 = vpop.permute.xlu0 %555
      %557 = vrot.lane.b32.xlu0 %v540, 20
      %v558 = vpop.permute.xlu0 %557
      %559 = vrot.lane.b32.xlu0 %v541, 20
      %v560 = vpop.permute.xlu0 %559
      %561 = vrot.lane.b32.xlu0 %v542, 20
      %v562 = vpop.permute.xlu0 %561
      %563 = vrot.lane.b32.xlu0 %v543, 20
      %v564 = vpop.permute.xlu0 %563
      %565 = vrot.lane.b32.xlu0 %v544, 20
      %v566 = vpop.permute.xlu0 %565
      %567 = vrot.lane.b32.xlu0 %v545, 20
      %v568 = vpop.permute.xlu0 %567
      %569 = vrot.lane.b32.xlu0 %v546, 20
      %v570 = vpop.permute.xlu0 %569
      %vm579 = vcmask 195744
      %580 = vst.msk [vmem:[#allocation3] sm:$0xff] %vm579, %v556
      %581 = vst.msk [vmem:[#allocation3 + $0x8] sm:$0xff] %vm579, %v558
      %582 = vst.msk [vmem:[#allocation3 + $0x10] sm:$0xff] %vm579, %v560
      %583 = vst.msk [vmem:[#allocation3 + $0x18] sm:$0xff] %vm579, %v562
      %584 = vst.msk [vmem:[#allocation3 + $0x20] sm:$0xff] %vm579, %v564
      %585 = vst.msk [vmem:[#allocation3 + $0x28] sm:$0xff] %vm579, %v566
      %586 = vst.msk [vmem:[#allocation3 + $0x30] sm:$0xff] %vm579, %v568
      %587 = vst.msk [vmem:[#allocation3 + $0x38] sm:$0xff] %vm579, %v570
      %s588 = scalar_lea.vmem [#allocation2], 32
      %v589 = vld [vmem:[%s588] sm:$0xff]
      %v590 = vld [vmem:[%s588 + $0x10] sm:$0xff]
      %v591 = vld [vmem:[%s588 + $0x20] sm:$0xff]
      %v592 = vld [vmem:[%s588 + $0x30] sm:$0xff]
      %v593 = vld [vmem:[%s588 + $0x40] sm:$0xff]
      %v594 = vld [vmem:[%s588 + $0x50] sm:$0xff]
      %v595 = vld [vmem:[%s588 + $0x60] sm:$0xff]
      %v596 = vld [vmem:[%s588 + $0x70] sm:$0xff]
      %605 = vrot.lane.b32.xlu0 %v589, 24
      %v606 = vpop.permute.xlu0 %605
      %607 = vrot.lane.b32.xlu0 %v590, 24
      %v608 = vpop.permute.xlu0 %607
      %609 = vrot.lane.b32.xlu0 %v591, 24
      %v610 = vpop.permute.xlu0 %609
      %611 = vrot.lane.b32.xlu0 %v592, 24
      %v612 = vpop.permute.xlu0 %611
      %613 = vrot.lane.b32.xlu0 %v593, 24
      %v614 = vpop.permute.xlu0 %613
      %615 = vrot.lane.b32.xlu0 %v594, 24
      %v616 = vpop.permute.xlu0 %615
      %617 = vrot.lane.b32.xlu0 %v595, 24
      %v618 = vpop.permute.xlu0 %617
      %619 = vrot.lane.b32.xlu0 %v596, 24
      %v620 = vpop.permute.xlu0 %619
      %vm629 = vcmask 228544
      %630 = vst.msk [vmem:[#allocation3] sm:$0xff] %vm629, %v606
      %631 = vst.msk [vmem:[#allocation3 + $0x8] sm:$0xff] %vm629, %v608
      %632 = vst.msk [vmem:[#allocation3 + $0x10] sm:$0xff] %vm629, %v610
      %633 = vst.msk [vmem:[#allocation3 + $0x18] sm:$0xff] %vm629, %v612
      %634 = vst.msk [vmem:[#allocation3 + $0x20] sm:$0xff] %vm629, %v614
      %635 = vst.msk [vmem:[#allocation3 + $0x28] sm:$0xff] %vm629, %v616
      %636 = vst.msk [vmem:[#allocation3 + $0x30] sm:$0xff] %vm629, %v618
      %637 = vst.msk [vmem:[#allocation3 + $0x38] sm:$0xff] %vm629, %v620
      %v638 = vld [vmem:[%s588 + $0x1] sm:$0xff]
      %v639 = vld [vmem:[%s588 + $0x11] sm:$0xff]
      %v640 = vld [vmem:[%s588 + $0x21] sm:$0xff]
      %v641 = vld [vmem:[%s588 + $0x31] sm:$0xff]
      %v642 = vld [vmem:[%s588 + $0x41] sm:$0xff]
      %v643 = vld [vmem:[%s588 + $0x51] sm:$0xff]
      %v644 = vld [vmem:[%s588 + $0x61] sm:$0xff]
      %v645 = vld [vmem:[%s588 + $0x71] sm:$0xff]
      %654 = vrot.lane.b32.xlu0 %v638, 28
      %v655 = vpop.permute.xlu0 %654
      %656 = vrot.lane.b32.xlu0 %v639, 28
      %v657 = vpop.permute.xlu0 %656
      %658 = vrot.lane.b32.xlu0 %v640, 28
      %v659 = vpop.permute.xlu0 %658
      %660 = vrot.lane.b32.xlu0 %v641, 28
      %v661 = vpop.permute.xlu0 %660
      %662 = vrot.lane.b32.xlu0 %v642, 28
      %v663 = vpop.permute.xlu0 %662
      %664 = vrot.lane.b32.xlu0 %v643, 28
      %v665 = vpop.permute.xlu0 %664
      %666 = vrot.lane.b32.xlu0 %v644, 28
      %v667 = vpop.permute.xlu0 %666
      %668 = vrot.lane.b32.xlu0 %v645, 28
      %v669 = vpop.permute.xlu0 %668
      %vm678 = vcmask 261344
      %679 = vst.msk [vmem:[#allocation3] sm:$0xff] %vm678, %v655
      %680 = vst.msk [vmem:[#allocation3 + $0x8] sm:$0xff] %vm678, %v657
      %681 = vst.msk [vmem:[#allocation3 + $0x10] sm:$0xff] %vm678, %v659
      %682 = vst.msk [vmem:[#allocation3 + $0x18] sm:$0xff] %vm678, %v661
      %683 = vst.msk [vmem:[#allocation3 + $0x20] sm:$0xff] %vm678, %v663
      %684 = vst.msk [vmem:[#allocation3 + $0x28] sm:$0xff] %vm678, %v665
      %685 = vst.msk [vmem:[#allocation3 + $0x30] sm:$0xff] %vm678, %v667
      %686 = vst.msk [vmem:[#allocation3 + $0x38] sm:$0xff] %vm678, %v669
      %v687 = vld [vmem:[%s588 + $0x2] sm:$0xff]
      %v688 = vld [vmem:[%s588 + $0x12] sm:$0xff]
      %v689 = vld [vmem:[%s588 + $0x22] sm:$0xff]
      %v690 = vld [vmem:[%s588 + $0x32] sm:$0xff]
      %v691 = vld [vmem:[%s588 + $0x42] sm:$0xff]
      %v692 = vld [vmem:[%s588 + $0x52] sm:$0xff]
      %v693 = vld [vmem:[%s588 + $0x62] sm:$0xff]
      %v694 = vld [vmem:[%s588 + $0x72] sm:$0xff]
      %703 = vrot.lane.b32.xlu0 %v687, 32
      %v704 = vpop.permute.xlu0 %703
      %705 = vrot.lane.b32.xlu0 %v688, 32
      %v706 = vpop.permute.xlu0 %705
      %707 = vrot.lane.b32.xlu0 %v689, 32
      %v708 = vpop.permute.xlu0 %707
      %709 = vrot.lane.b32.xlu0 %v690, 32
      %v710 = vpop.permute.xlu0 %709
      %711 = vrot.lane.b32.xlu0 %v691, 32
      %v712 = vpop.permute.xlu0 %711
      %713 = vrot.lane.b32.xlu0 %v692, 32
      %v714 = vpop.permute.xlu0 %713
      %715 = vrot.lane.b32.xlu0 %v693, 32
      %v716 = vpop.permute.xlu0 %715
      %717 = vrot.lane.b32.xlu0 %v694, 32
      %v718 = vpop.permute.xlu0 %717
      %vm727 = vcmask 294144
      %728 = vst.msk [vmem:[#allocation3] sm:$0xff] %vm727, %v704
      %729 = vst.msk [vmem:[#allocation3 + $0x8] sm:$0xff] %vm727, %v706
      %730 = vst.msk [vmem:[#allocation3 + $0x10] sm:$0xff] %vm727, %v708
      %731 = vst.msk [vmem:[#allocation3 + $0x18] sm:$0xff] %vm727, %v710
      %732 = vst.msk [vmem:[#allocation3 + $0x20] sm:$0xff] %vm727, %v712
      %733 = vst.msk [vmem:[#allocation3 + $0x28] sm:$0xff] %vm727, %v714
      %734 = vst.msk [vmem:[#allocation3 + $0x30] sm:$0xff] %vm727, %v716
      %735 = vst.msk [vmem:[#allocation3 + $0x38] sm:$0xff] %vm727, %v718
      %v736 = vld [vmem:[#allocation3] sm:$0xff]
      %v737 = vld [vmem:[#allocation3 + $0x8] sm:$0xff]
      %v738 = vld [vmem:[#allocation3 + $0x10] sm:$0xff]
      %v739 = vld [vmem:[#allocation3 + $0x18] sm:$0xff]
      %v740 = vld [vmem:[#allocation3 + $0x20] sm:$0xff]
      %v741 = vld [vmem:[#allocation3 + $0x28] sm:$0xff]
      %v742 = vld [vmem:[#allocation3 + $0x30] sm:$0xff]
      %v743 = vld [vmem:[#allocation3 + $0x38] sm:$0xff]
      %v744 = vpack.c.bf16 %v737, %v736
      %v745 = vpack.c.bf16 %v739, %v738
      %v746 = vpack.c.bf16 %v741, %v740
      %v747 = vpack.c.bf16 %v743, %v742
      %v748 = vld [vmem:[%s3] sm:$0xf]
      %v749 = vld [vmem:[%s3 + $0x4] sm:$0xf]
      %v750 = vld [vmem:[%s3 + $0x8] sm:$0xf]
      %v751 = vld [vmem:[%s3 + $0xc] sm:$0xf]
      %v752 = vld [vmem:[%s3 + $0x10] sm:$0xf]
      %v753 = vld [vmem:[%s3 + $0x14] sm:$0xf]
      %v754 = vld [vmem:[%s3 + $0x18] sm:$0xf]
      %v755 = vld [vmem:[%s3 + $0x1c] sm:$0xf]
      %v756 = vld [vmem:[%s3 + $0x20] sm:$0xf]
      %v757 = vld [vmem:[%s3 + $0x24] sm:$0xf]
      %v758 = vld [vmem:[%s3 + $0x28] sm:$0xf]
      %v759 = vld [vmem:[%s3 + $0x2c] sm:$0xf]
      %v760 = vld [vmem:[%s3 + $0x30] sm:$0xf]
      %v761 = vld [vmem:[%s3 + $0x34] sm:$0xf]
      %v762 = vld [vmem:[%s3 + $0x38] sm:$0xf]
      %v763 = vld [vmem:[%s3 + $0x3c] sm:$0xf]
      %v780 = vunpack.c.l.b16 %v748
      %v781 = vunpack.c.l.b16 %v749
      %v782 = vunpack.c.l.b16 %v750
      %v783 = vunpack.c.l.b16 %v751
      %v784 = vunpack.c.l.b16 %v752
      %v785 = vunpack.c.l.b16 %v753
      %v786 = vunpack.c.l.b16 %v754
      %v787 = vunpack.c.l.b16 %v755
      %v788 = vunpack.c.l.b16 %v756
      %v789 = vunpack.c.l.b16 %v757
      %v790 = vunpack.c.l.b16 %v758
      %v791 = vunpack.c.l.b16 %v759
      %v792 = vunpack.c.l.b16 %v760
      %v793 = vunpack.c.l.b16 %v761
      %v794 = vunpack.c.l.b16 %v762
      %v795 = vunpack.c.l.b16 %v763
      %v796 = vpack.c.b16 %v781, %v780
      %v797 = vpack.c.b16 %v783, %v782
      %v798 = vpack.c.b16 %v785, %v784
      %v799 = vpack.c.b16 %v787, %v786
      %v800 = vpack.c.b16 %v789, %v788
      %v801 = vpack.c.b16 %v791, %v790
      %v802 = vpack.c.b16 %v793, %v792
      %v803 = vpack.c.b16 %v795, %v794
      %812 = vmatprep.subr.bf16.mxu0 0
      %813 = vmatpush1.bf16.msra.mxu0 %v796
      %814 = vmatprep.subr.bf16.mxu0 0
      %815 = vmatpush1.bf16.msra.mxu0 %v797
      %816 = vmatprep.subr.bf16.mxu0 0
      %817 = vmatpush1.bf16.msra.mxu0 %v798
      %818 = vmatprep.subr.bf16.mxu0 0
      %819 = vmatpush1.bf16.msra.mxu0 %v799
      %820 = vmatprep.subr.bf16.mxu0 0
      %821 = vmatpush1.bf16.msra.mxu0 %v800
      %822 = vmatprep.subr.bf16.mxu0 0
      %823 = vmatpush1.bf16.msra.mxu0 %v801
      %824 = vmatprep.subr.bf16.mxu0 0
      %825 = vmatpush1.bf16.msra.mxu0 %v802
      %826 = vmatprep.subr.bf16.mxu0 0
      %827 = vmatpush1.bf16.msra.mxu0 %v803
      %828 = vmatprep.subr.bf16.mxu0 0
      %829 = vmatpush1.bf16.msra.mxu0 0
      %830 = vmatprep.subr.bf16.mxu0 0
      %831 = vmatpush1.bf16.msra.mxu0 0
      %832 = vmatprep.subr.bf16.mxu0 0
      %833 = vmatpush1.bf16.msra.mxu0 0
      %834 = vmatprep.subr.bf16.mxu0 0
      %835 = vmatpush1.bf16.msra.mxu0 0
      %836 = vmatprep.subr.bf16.mxu0 0
      %837 = vmatpush1.bf16.msra.mxu0 0
      %838 = vmatprep.subr.bf16.mxu0 0
      %839 = vmatpush1.bf16.msra.mxu0 0
      %840 = vmatprep.subr.bf16.mxu0 0
      %841 = vmatpush1.bf16.msra.mxu0 0
      %842 = vmatprep.subr.bf16.mxu0 0
      %843 = vmatpush1.bf16.msra.mxu0 0
      %844 = vmatprep.mubr.bf16.mxu0 0
      %845 = vmatmul.mubr.bf16.gmra.mrb[0].mxu0 %v744
      %v846 = vpop.f32.mrb[0].mxu0
      %v847 = vadd.f32 0.0, %v846
      %v848 = vpop.f32.mrb[0].mxu0
      %v849 = vpop.f32.mrb[0].mxu0
      %v850 = vadd.f32 0.0, %v849
      %v851 = vpop.f32.mrb[0].mxu0
      %852 = vmatprep.mubr.bf16.mxu0 0
      %853 = vmatmul.mubr.bf16.gmra.mrb[0].mxu0 %v745
      %v854 = vpop.f32.mrb[0].mxu0
      %v855 = vadd.f32 0.0, %v854
      %v856 = vpop.f32.mrb[0].mxu0
      %v857 = vpop.f32.mrb[0].mxu0
      %v858 = vadd.f32 0.0, %v857
      %v859 = vpop.f32.mrb[0].mxu0
      %860 = vmatprep.mubr.bf16.mxu0 0
      %861 = vmatmul.mubr.bf16.gmra.mrb[0].mxu0 %v746
      %v862 = vpop.f32.mrb[0].mxu0
      %v863 = vadd.f32 0.0, %v862
      %v864 = vpop.f32.mrb[0].mxu0
      %v865 = vpop.f32.mrb[0].mxu0
      %v866 = vadd.f32 0.0, %v865
      %v867 = vpop.f32.mrb[0].mxu0
      %868 = vmatprep.mubr.bf16.mxu0 0
      %869 = vmatmul.mubr.bf16.gmra.mrb[0].mxu0 %v747
      %v870 = vpop.f32.mrb[0].mxu0
      %v871 = vadd.f32 0.0, %v870
      %v872 = vpop.f32.mrb[0].mxu0
      %v873 = vpop.f32.mrb[0].mxu0
      %v874 = vadd.f32 0.0, %v873
      %v875 = vpop.f32.mrb[0].mxu0
      %876 = vdwg.mxu0
      %v877 = vpack.c.bf16 %v847, %v847
      %v878 = vpack.c.bf16 %v850, %v850
      %v879 = vpack.c.bf16 %v855, %v855
      %v880 = vpack.c.bf16 %v858, %v858
      %v881 = vpack.c.bf16 %v863, %v863
      %v882 = vpack.c.bf16 %v866, %v866
      %v883 = vpack.c.bf16 %v871, %v871
      %v884 = vpack.c.bf16 %v874, %v874
      %885 = vst [vmem:[%s231] sm:$0xf] %v877
      %886 = vst [vmem:[%s231 + $0x4] sm:$0xf] %v878
      %887 = vst [vmem:[%s231 + $0x8] sm:$0xf] %v879
      %888 = vst [vmem:[%s231 + $0xc] sm:$0xf] %v880
      %889 = vst [vmem:[%s231 + $0x10] sm:$0xf] %v881
      %890 = vst [vmem:[%s231 + $0x14] sm:$0xf] %v882
      %891 = vst [vmem:[%s231 + $0x18] sm:$0xf] %v883
      %892 = vst [vmem:[%s231 + $0x1c] sm:$0xf] %v884
      %v893 = vadd.f32 %v847, %v850
      %v894 = vadd.f32 %v893, %v855
      %v895 = vadd.f32 %v894, %v858
      %v896 = vadd.f32 %v895, %v863
      %v897 = vadd.f32 %v896, %v866
      %v898 = vadd.f32 %v897, %v871
      %v899 = vadd.f32 %v898, %v874
      %v900 = vrot.slane %v899, 4
      %v901 = vadd.f32 %v899, %v900
      %v902 = vrot.slane %v901, 2
      %v903 = vadd.f32 %v901, %v902
      %v904 = vrot.slane %v903, 1
      %v905 = vadd.f32 %v903, %v904
      %906 = vst [vmem:[%s235] sm:$0x1] %v905
      %v907 = vmul.f32 %v847, %v847
      %v908 = vmul.f32 %v850, %v850
      %v909 = vmul.f32 %v855, %v855
      %v910 = vmul.f32 %v858, %v858
      %v911 = vmul.f32 %v863, %v863
      %v912 = vmul.f32 %v866, %v866
      %v913 = vmul.f32 %v871, %v871
      %v914 = vmul.f32 %v874, %v874
      %v915 = vadd.f32 %v907, %v908
      %v916 = vadd.f32 %v915, %v909
      %v917 = vadd.f32 %v916, %v910
      %v918 = vadd.f32 %v917, %v911
      %v919 = vadd.f32 %v918, %v912
      %v920 = vadd.f32 %v919, %v913
      %v921 = vadd.f32 %v920, %v914
      %v922 = vrot.slane %v921, 4
      %v923 = vadd.f32 %v921, %v922
      %v924 = vrot.slane %v923, 2
      %v925 = vadd.f32 %v923, %v924
      %v926 = vrot.slane %v925, 1
      %v927 = vadd.f32 %v925, %v926
      %928 = vst [vmem:[%s235 + $0x1] sm:$0x1] %v927
      %p929 = scmp.lt.s32.totalorder %s17, 1
      %s930 = scalar_select %p929, %s17, 1
      %s931 = smul.addr %s930, 8
      %s932 = smul.addr %s931, 4
      %s933 = scalar_lea.vmem %s4, %s932
      %p934 = scmp.lt.s32.totalorder %s17, 1
      %s935 = scalar_select %p934, %s17, 1
      %s936 = smul.addr %s935, 2
      %s937 = scalar_lea.vmem %s5, %s936
      // Predicated region
      $region41: #{down_forward.4} parent=35 // pred_check
        %p938 = pneg %p124
      $region42: #{down_forward.4} parent=35 // pred_check_branch
        %940 = sbr.rel (%p938) target = $region44
      $region43: #{down_forward.4} parent=35 // pred_region
        _
      $region44: #{down_forward.4} parent=35 // pred_fallthru
        _
      // Predicated region
      $region45: #{down_forward.4} parent=35 // pred_check
        %p941 = pneg %p150
      $region46: #{down_forward.4} parent=35 // pred_check_branch
        %943 = sbr.rel (%p941) target = $region48
      $region47: #{down_forward.4} parent=35 // pred_region
        _
      $region48: #{down_forward.4} parent=35 // pred_fallthru
        _
    $region36: #{down_forward.4} parent=5 // pred_fallthru
      _
    %p944 = scmp.le.s32.totalorder 2, %s12
    // Predicated region
    $region49: #{down_forward.4} parent=5 // pred_check
      %p945 = pneg %p944
    $region50: #{down_forward.4} parent=5 // pred_check_branch
      %947 = sbr.rel (%p945) target = $region52
    $region51: #{down_forward.4} parent=5 // pred_region
      %s948 = ssub.s32 %s12, 2
      // Predicated region
      $region53: #{down_forward.4} parent=51 // pred_check
        %p949 = pneg %p130
      $region54: #{down_forward.4} parent=51 // pred_check_branch
        %951 = sbr.rel (%p949) target = $region56
      $region55: #{down_forward.4} parent=51 // pred_region
        %p952 = scmp.lt.s32.totalorder %s18, 1
        %s953 = scalar_select %p952, %s18, 1
        %s954 = smul.addr %s953, 8
        %s955 = smul.addr %s954, 4
        %s956 = scalar_lea.vmem %s4, %s955
      $region56: #{down_forward.4} parent=51 // pred_fallthru
        _
      // Predicated region
      $region57: #{down_forward.4} parent=51 // pred_check
        %p957 = pneg %p156
      $region58: #{down_forward.4} parent=51 // pred_check_branch
        %959 = sbr.rel (%p957) target = $region60
      $region59: #{down_forward.4} parent=51 // pred_region
        %p960 = scmp.lt.s32.totalorder %s18, 1
        %s961 = scalar_select %p960, %s18, 1
        %s962 = smul.addr %s961, 2
        %s963 = scalar_lea.vmem %s5, %s962
      $region60: #{down_forward.4} parent=51 // pred_fallthru
        _
    $region52: #{down_forward.4} parent=5 // pred_fallthru
      _
  $region6: #{down_forward.4} parent=0 // loop_footer
    %s16 = sadd.s32 1, %s12
  $region7: #{down_forward.4} parent=0 // loop_footer_branch
    %11 = sbr.rel target = $region3
  $region8: #{down_forward.4} parent=0 // loop_exit
    _

// kernel: down_forward.5
$region0: #{down_forward.5}
  #allocation0 [shape = 'u32[]', space=smem, size = 0x4, offset = 0x4, fixed_abs, tag = 'smem constant byte address 0x4 - core index']
  #allocation1 [shape = 'u32[144,128]{1,0:T(1,128)}', space=vmem, size = 0x12000, scoped, tag = 'internal scratch']
  #allocation2 [shape = 'f32[10,10,8]{2,1,0:T(8,128)}', space=vmem, size = 0x14000, scoped, tag = 'scratch operand']
  #allocation3 [shape = 'f32[8,8,128]{2,1,0:T(8,128)}', space=vmem, size = 0x8000, scoped, tag = 'scratch operand']
  %s0 = inlined_call_operand.vmem [shape: bf16[2,8,8,128], index: 0, kind: input, shape index: {}]
  %s1 = inlined_call_operand.vmem [shape: f32[1,128], index: 1, kind: input, shape index: {}]
  %s2 = inlined_call_operand.vmem [shape: f32[1,128], index: 2, kind: input, shape index: {}]
  %s3 = inlined_call_operand.vmem [shape: bf16[128,128], index: 3, kind: input, shape index: {}]
  %s4 = inlined_call_operand.vmem [shape: f32[2,8,8,128], index: 4, kind: output, shape index: {}]
  %s5 = sld [smem:[#allocation0]]
  $region53: #{down_forward.5} parent=0
    _
  %s7 = ssub.s32 1, %s5
  %s8 = scalar_select 0, %s7, %s5
  loop: start=0, step=1, limit=4
  $region2: #{down_forward.5} parent=0 // loop_pre_header
    _
  $region3: #{down_forward.5} parent=0 // loop_header
    %s10 = sphi 0, %s14
    %p11 = scmp.ge.s32.totalorder %s10, 4
    %s20 = sphi 0, %s22
    %s23 = sphi 0, %s20
    %s24 = sphi 0, %s23
    %s40 = sphi 0, %s24
    %s44 = sphi 0, %s44
    %s46 = sphi 0, %s44
    %s47 = sphi 0, %s46
    %s61 = sphi 0, %s47
    %s65 = sphi 0, %s65
    %s67 = sphi 0, %s65
    %s68 = sphi 0, %s67
    %s82 = sphi 0, %s68
    %s86 = sphi 0, %s86
    %s88 = sphi 0, %s86
    %s89 = sphi 0, %s88
    %s103 = sphi 0, %s89
    %s109 = sphi 0, %s111
    %s112 = sphi 0, %s109
    %s113 = sphi 0, %s112
    %s129 = sphi 0, %s113
  $region4: #{down_forward.5} parent=0 // loop_header_branch
    %13 = sbr.rel (%p11) target = $region8
  $region5: #{down_forward.5} parent=0 // loop_body
    %s15 = ssub.s32 %s10, 1
    %s16 = ssub.s32 %s10, 2
    %s17 = sadd.s32 %s10, 1
    %s18 = ssub.s32 %s10, %s17
    %p19 = scmp.eq.s32.totalorder %s18, 0
    %s21 = sadd.s32 %s20, 1
    %s22 = scalar_select %p19, %s20, %s21
    %p25 = pneg %p19
    %p26 = scmp.eq.s32.totalorder %s10, 1
    %p27 = por %p25, %p26
    %p28 = scmp.ne.s32.totalorder %s20, %s23
    %p29 = scmp.eq.s32.totalorder %s10, 0
    %p30 = por %p28, %p29
    %p31 = scmp.ne.s32.totalorder %s20, %s23
    %p32 = scmp.eq.s32.totalorder %s15, 1
    %p33 = por %p31, %p32
    %p34 = scmp.ne.s32.totalorder %s23, %s24
    %p35 = scmp.eq.s32.totalorder %s15, 0
    %p36 = por %p34, %p35
    %p37 = scmp.ne.s32.totalorder %s23, %s24
    %p38 = scmp.eq.s32.totalorder %s16, 1
    %p39 = por %p37, %p38
    %p41 = scmp.ne.s32.totalorder %s24, %s40
    %p42 = scmp.eq.s32.totalorder %s16, 0
    %p43 = por %p41, %p42
    %s45 = sadd.s32 %s44, 1
    %p48 = scmp.eq.s32.totalorder %s10, 1
    %p49 = scmp.ne.s32.totalorder %s44, %s46
    %p50 = scmp.eq.s32.totalorder %s10, 0
    %p51 = por %p49, %p50
    %p52 = scmp.ne.s32.totalorder %s44, %s46
    %p53 = scmp.eq.s32.totalorder %s15, 1
    %p54 = por %p52, %p53
    %p55 = scmp.ne.s32.totalorder %s46, %s47
    %p56 = scmp.eq.s32.totalorder %s15, 0
    %p57 = por %p55, %p56
    %p58 = scmp.ne.s32.totalorder %s46, %s47
    %p59 = scmp.eq.s32.totalorder %s16, 1
    %p60 = por %p58, %p59
    %p62 = scmp.ne.s32.totalorder %s47, %s61
    %p63 = scmp.eq.s32.totalorder %s16, 0
    %p64 = por %p62, %p63
    %s66 = sadd.s32 %s65, 1
    %p69 = scmp.eq.s32.totalorder %s10, 1
    %p70 = scmp.ne.s32.totalorder %s65, %s67
    %p71 = scmp.eq.s32.totalorder %s10, 0
    %p72 = por %p70, %p71
    %p73 = scmp.ne.s32.totalorder %s65, %s67
    %p74 = scmp.eq.s32.totalorder %s15, 1
    %p75 = por %p73, %p74
    %p76 = scmp.ne.s32.totalorder %s67, %s68
    %p77 = scmp.eq.s32.totalorder %s15, 0
    %p78 = por %p76, %p77
    %p79 = scmp.ne.s32.totalorder %s67, %s68
    %p80 = scmp.eq.s32.totalorder %s16, 1
    %p81 = por %p79, %p80
    %p83 = scmp.ne.s32.totalorder %s68, %s82
    %p84 = scmp.eq.s32.totalorder %s16, 0
    %p85 = por %p83, %p84
    %s87 = sadd.s32 %s86, 1
    %p90 = scmp.eq.s32.totalorder %s10, 1
    %p91 = scmp.ne.s32.totalorder %s86, %s88
    %p92 = scmp.eq.s32.totalorder %s10, 0
    %p93 = por %p91, %p92
    %p94 = scmp.ne.s32.totalorder %s86, %s88
    %p95 = scmp.eq.s32.totalorder %s15, 1
    %p96 = por %p94, %p95
    %p97 = scmp.ne.s32.totalorder %s88, %s89
    %p98 = scmp.eq.s32.totalorder %s15, 0
    %p99 = por %p97, %p98
    %p100 = scmp.ne.s32.totalorder %s88, %s89
    %p101 = scmp.eq.s32.totalorder %s16, 1
    %p102 = por %p100, %p101
    %p104 = scmp.ne.s32.totalorder %s89, %s103
    %p105 = scmp.eq.s32.totalorder %s16, 0
    %p106 = por %p104, %p105
    %s107 = ssub.s32 %s10, %s17
    %p108 = scmp.eq.s32.totalorder %s107, 0
    %s110 = sadd.s32 %s109, 1
    %s111 = scalar_select %p108, %s109, %s110
    %p114 = pneg %p108
    %p115 = scmp.eq.s32.totalorder %s10, 1
    %p116 = por %p114, %p115
    %p117 = scmp.ne.s32.totalorder %s109, %s112
    %p118 = scmp.eq.s32.totalorder %s10, 0
    %p119 = por %p117, %p118
    %p120 = scmp.ne.s32.totalorder %s109, %s112
    %p121 = scmp.eq.s32.totalorder %s15, 1
    %p122 = por %p120, %p121
    %p123 = scmp.ne.s32.totalorder %s112, %s113
    %p124 = scmp.eq.s32.totalorder %s15, 0
    %p125 = por %p123, %p124
    %p126 = scmp.ne.s32.totalorder %s112, %s113
    %p127 = scmp.eq.s32.totalorder %s16, 1
    %p128 = por %p126, %p127
    %p130 = scmp.ne.s32.totalorder %s113, %s129
    %p131 = scmp.eq.s32.totalorder %s16, 0
    %p132 = por %p130, %p131
    %p133 = scmp.le.s32.totalorder 1, %s10
    %p134 = scmp.lt.s32.totalorder %s10, 3
    %p135 = pnand %p133, %p134
    %p136 = pneg %p135
    // Predicated region
    $region9: #{down_forward.5} parent=5 // pred_check
      _
    $region10: #{down_forward.5} parent=5 // pred_check_branch
      %138 = sbr.rel (%p135) target = $region12
    $region11: #{down_forward.5} parent=5 // pred_region
      %s139 = ssub.s32 %s10, 1
      // Predicated region
      $region13: #{down_forward.5} parent=11 // pred_check
        %p140 = pneg %p57
      $region14: #{down_forward.5} parent=11 // pred_check_branch
        %142 = sbr.rel (%p140) target = $region16
      $region15: #{down_forward.5} parent=11 // pred_region
        _
      $region16: #{down_forward.5} parent=11 // pred_fallthru
        _
      // Predicated region
      $region17: #{down_forward.5} parent=11 // pred_check
        %p143 = pneg %p78
      $region18: #{down_forward.5} parent=11 // pred_check_branch
        %145 = sbr.rel (%p143) target = $region20
      $region19: #{down_forward.5} parent=11 // pred_region
        _
      $region20: #{down_forward.5} parent=11 // pred_fallthru
        _
      // Predicated region
      $region21: #{down_forward.5} parent=11 // pred_check
        %p146 = pneg %p99
      $region22: #{down_forward.5} parent=11 // pred_check_branch
        %148 = sbr.rel (%p146) target = $region24
      $region23: #{down_forward.5} parent=11 // pred_region
        _
      $region24: #{down_forward.5} parent=11 // pred_fallthru
        _
    $region12: #{down_forward.5} parent=5 // pred_fallthru
      _
    %p149 = scmp.lt.s32.totalorder %s10, 2
    // Predicated region
    $region25: #{down_forward.5} parent=5 // pred_check
      %p150 = pneg %p149
    $region26: #{down_forward.5} parent=5 // pred_check_branch
      %152 = sbr.rel (%p150) target = $region28
    $region27: #{down_forward.5} parent=5 // pred_region
      // Predicated region
      $region29: #{down_forward.5} parent=27 // pred_check
        %p153 = pneg %p30
      $region30: #{down_forward.5} parent=27 // pred_check_branch
        %155 = sbr.rel (%p153) target = $region32
      $region31: #{down_forward.5} parent=27 // pred_region
        %p156 = scmp.lt.s32.totalorder %s10, 1
        %s157 = scalar_select %p156, %s10, 1
        %s158 = smul.addr %s157, 8
        %s159 = smul.addr %s158, 4
        %s160 = scalar_lea.vmem %s0, %s159
      $region32: #{down_forward.5} parent=27 // pred_fallthru
        _
    $region28: #{down_forward.5} parent=5 // pred_fallthru
      _
    %p161 = scmp.le.s32.totalorder 1, %s10
    %p162 = scmp.lt.s32.totalorder %s10, 3
    %p163 = pnand %p161, %p162
    %p164 = pneg %p163
    // Predicated region
    $region33: #{down_forward.5} parent=5 // pred_check
      _
    $region34: #{down_forward.5} parent=5 // pred_check_branch
      %166 = sbr.rel (%p163) target = $region36
    $region35: #{down_forward.5} parent=5 // pred_region
      %s167 = ssub.s32 %s10, 1
      %p168 = scmp.lt.s32.totalorder %s15, 1
      %s169 = scalar_select %p168, %s15, 1
      %s170 = smul.addr %s169, 8
      %s171 = smul.addr %s170, 4
      %s172 = scalar_lea.vmem %s0, %s171
      %p173 = pneg %p36
      %p174 = pneg %p33
      %p175 = pneg %p57
      %p176 = pneg %p54
      %p177 = pneg %p78
      %p178 = pneg %p75
      %p179 = pneg %p99
      %p180 = pneg %p96
      %p181 = pneg %p125
      %p182 = pneg %p122
      %p183 = scmp.lt.s32.totalorder %s15, 1
      %s184 = scalar_select %p183, %s15, 1
      %s185 = smul.addr %s184, 8
      %s186 = smul.addr %s185, 8
      %s187 = scalar_lea.vmem %s4, %s186
      %p188 = scmp.lt.s32.totalorder %s15, 1
      %s189 = scalar_select %p188, %s15, 1
      %s190 = smul.addr %s189, 8
      %s191 = smul.addr %s190, 4
      %s192 = scalar_lea.vmem %s0, %s191
      %p193 = scmp.lt.s32.totalorder %s15, 1
      %s194 = scalar_select %p193, %s15, 1
      %s195 = smul.addr %s194, 8
      %s196 = smul.addr %s195, 8
      %s197 = scalar_lea.vmem %s4, %s196
      %p199 = scmp.eq.s32.totalorder %s15, 0
      // Predicated region
      $region37: #{down_forward.5} parent=35 // pred_check
        %p200 = pneg %p199
      $region38: #{down_forward.5} parent=35 // pred_check_branch
        %202 = sbr.rel (%p200) target = $region40
      $region39: #{down_forward.5} parent=35 // pred_region
        %vm203 = vcmask 64512
        %204 = vst.msk [vmem:[#allocation2] sm:$0xff] %vm203, 0.0
        %vm205 = vcmask 58368
        %206 = vst.msk [vmem:[#allocation2 + $0x8] sm:$0x3] %vm205, 0.0
        %207 = vst.msk [vmem:[#allocation2 + $0x10] sm:$0xff] %vm203, 0.0
        %208 = vst.msk [vmem:[#allocation2 + $0x18] sm:$0x3] %vm205, 0.0
        %209 = vst.msk [vmem:[#allocation2 + $0x20] sm:$0xff] %vm203, 0.0
        %210 = vst.msk [vmem:[#allocation2 + $0x28] sm:$0x3] %vm205, 0.0
        %211 = vst.msk [vmem:[#allocation2 + $0x30] sm:$0xff] %vm203, 0.0
        %212 = vst.msk [vmem:[#allocation2 + $0x38] sm:$0x3] %vm205, 0.0
        %213 = vst.msk [vmem:[#allocation2 + $0x40] sm:$0xff] %vm203, 0.0
        %214 = vst.msk [vmem:[#allocation2 + $0x48] sm:$0x3] %vm205, 0.0
        %215 = vst.msk [vmem:[#allocation2 + $0x50] sm:$0xff] %vm203, 0.0
        %216 = vst.msk [vmem:[#allocation2 + $0x58] sm:$0x3] %vm205, 0.0
        %217 = vst.msk [vmem:[#allocation2 + $0x60] sm:$0xff] %vm203, 0.0
        %218 = vst.msk [vmem:[#allocation2 + $0x68] sm:$0x3] %vm205, 0.0
        %219 = vst.msk [vmem:[#allocation2 + $0x70] sm:$0xff] %vm203, 0.0
        %220 = vst.msk [vmem:[#allocation2 + $0x78] sm:$0x3] %vm205, 0.0
        %221 = vst.msk [vmem:[#allocation2 + $0x80] sm:$0xff] %vm203, 0.0
        %222 = vst.msk [vmem:[#allocation2 + $0x88] sm:$0x3] %vm205, 0.0
        %223 = vst.msk [vmem:[#allocation2 + $0x90] sm:$0xff] %vm203, 0.0
        %224 = vst.msk [vmem:[#allocation2 + $0x98] sm:$0x3] %vm205, 0.0
        %225 = vst [vmem:[#allocation3] sm:$0xff] 0.0
        %226 = vst [vmem:[#allocation3 + $0x8] sm:$0xff] 0.0
        %227 = vst [vmem:[#allocation3 + $0x10] sm:$0xff] 0.0
        %228 = vst [vmem:[#allocation3 + $0x18] sm:$0xff] 0.0
        %229 = vst [vmem:[#allocation3 + $0x20] sm:$0xff] 0.0
        %230 = vst [vmem:[#allocation3 + $0x28] sm:$0xff] 0.0
        %231 = vst [vmem:[#allocation3 + $0x30] sm:$0xff] 0.0
        %232 = vst [vmem:[#allocation3 + $0x38] sm:$0xff] 0.0
      $region40: #{down_forward.5} parent=35 // pred_fallthru
        _
      %v233 = vld [vmem:[%s192] sm:$0xf]
      %v234 = vld [vmem:[%s192 + $0x4] sm:$0xf]
      %v235 = vld [vmem:[%s192 + $0x8] sm:$0xf]
      %v236 = vld [vmem:[%s192 + $0xc] sm:$0xf]
      %v237 = vld [vmem:[%s192 + $0x10] sm:$0xf]
      %v238 = vld [vmem:[%s192 + $0x14] sm:$0xf]
      %v239 = vld [vmem:[%s192 + $0x18] sm:$0xf]
      %v240 = vld [vmem:[%s192 + $0x1c] sm:$0xf]
      %v241 = vunpack.c.l.bf16 %v233
      %v242 = vunpack.c.l.bf16 %v234
      %v243 = vunpack.c.l.bf16 %v235
      %v244 = vunpack.c.l.bf16 %v236
      %v245 = vunpack.c.l.bf16 %v237
      %v246 = vunpack.c.l.bf16 %v238
      %v247 = vunpack.c.l.bf16 %v239
      %v248 = vunpack.c.l.bf16 %v240
      %v249 = vld [vmem:[%s1] sm:$0x1]
      %v250 = vld [vmem:[%s2] sm:$0x1]
      %v252 = vlaneseq
      %v253 = vshrl.u32 %v252, 7
      %v254 = vsub.s32 0, %v253
      %v255 = vrot.slane %v249, %v254
      %v257 = vmul.f32 %v241, %v255
      %v258 = vmul.f32 %v242, %v255
      %v259 = vmul.f32 %v243, %v255
      %v260 = vmul.f32 %v244, %v255
      %v261 = vmul.f32 %v245, %v255
      %v262 = vmul.f32 %v246, %v255
      %v263 = vmul.f32 %v247, %v255
      %v264 = vmul.f32 %v248, %v255
      %v266 = vlaneseq
      %v267 = vshrl.u32 %v266, 7
      %v268 = vsub.s32 0, %v267
      %v269 = vrot.slane %v250, %v268
      %v271 = vadd.f32 %v257, %v269
      %v272 = vadd.f32 %v258, %v269
      %v273 = vadd.f32 %v259, %v269
      %v274 = vadd.f32 %v260, %v269
      %v275 = vadd.f32 %v261, %v269
      %v276 = vadd.f32 %v262, %v269
      %v277 = vadd.f32 %v263, %v269
      %v278 = vadd.f32 %v264, %v269
      %v279 = vmax.f32 %v271, 0.0
      %v280 = vmax.f32 %v272, 0.0
      %v281 = vmax.f32 %v273, 0.0
      %v282 = vmax.f32 %v274, 0.0
      %v283 = vmax.f32 %v275, 0.0
      %v284 = vmax.f32 %v276, 0.0
      %v285 = vmax.f32 %v277, 0.0
      %v286 = vmax.f32 %v278, 0.0
      %295 = vrot.lane.b32.xlu0 %v279, 120
      %v296 = vpop.permute.xlu0 %295
      %297 = vrot.lane.b32.xlu0 %v280, 120
      %v298 = vpop.permute.xlu0 %297
      %299 = vrot.lane.b32.xlu0 %v281, 120
      %v300 = vpop.permute.xlu0 %299
      %301 = vrot.lane.b32.xlu0 %v282, 120
      %v302 = vpop.permute.xlu0 %301
      %303 = vrot.lane.b32.xlu0 %v283, 120
      %v304 = vpop.permute.xlu0 %303
      %305 = vrot.lane.b32.xlu0 %v284, 120
      %v306 = vpop.permute.xlu0 %305
      %307 = vrot.lane.b32.xlu0 %v285, 120
      %v308 = vpop.permute.xlu0 %307
      %309 = vrot.lane.b32.xlu0 %v286, 120
      %v310 = vpop.permute.xlu0 %309
      %s319 = scalar_lea.vmem [#allocation2], 16
      %vm320 = vcmask 64512
      %321 = vst.msk [vmem:[%s319 + $0x1] sm:$0xff] %vm320, %v296
      %322 = vst.msk [vmem:[%s319 + $0x11] sm:$0xff] %vm320, %v298
      %323 = vst.msk [vmem:[%s319 + $0x21] sm:$0xff] %vm320, %v300
      %324 = vst.msk [vmem:[%s319 + $0x31] sm:$0xff] %vm320, %v302
      %325 = vst.msk [vmem:[%s319 + $0x41] sm:$0xff] %vm320, %v304
      %326 = vst.msk [vmem:[%s319 + $0x51] sm:$0xff] %vm320, %v306
      %327 = vst.msk [vmem:[%s319 + $0x61] sm:$0xff] %vm320, %v308
      %328 = vst.msk [vmem:[%s319 + $0x71] sm:$0xff] %vm320, %v310
      %v329 = vld [vmem:[#allocation2] sm:$0xff]
      %v330 = vld [vmem:[#allocation2 + $0x10] sm:$0xff]
      %v331 = vld [vmem:[#allocation2 + $0x20] sm:$0xff]
      %v332 = vld [vmem:[#allocation2 + $0x30] sm:$0xff]
      %v333 = vld [vmem:[#allocation2 + $0x40] sm:$0xff]
      %v334 = vld [vmem:[#allocation2 + $0x50] sm:$0xff]
      %v335 = vld [vmem:[#allocation2 + $0x60] sm:$0xff]
      %v336 = vld [vmem:[#allocation2 + $0x70] sm:$0xff]
      %337 = vst.msk [vmem:[#allocation3] sm:$0xff] %vm320, %v329
      %338 = vst.msk [vmem:[#allocation3 + $0x8] sm:$0xff] %vm320, %v330
      %339 = vst.msk [vmem:[#allocation3 + $0x10] sm:$0xff] %vm320, %v331
      %340 = vst.msk [vmem:[#allocation3 + $0x18] sm:$0xff] %vm320, %v332
      %341 = vst.msk [vmem:[#allocation3 + $0x20] sm:$0xff] %vm320, %v333
      %342 = vst.msk [vmem:[#allocation3 + $0x28] sm:$0xff] %vm320, %v334
      %343 = vst.msk [vmem:[#allocation3 + $0x30] sm:$0xff] %vm320, %v335
      %344 = vst.msk [vmem:[#allocation3 + $0x38] sm:$0xff] %vm320, %v336
      %v345 = vld [vmem:[#allocation2 + $0x1] sm:$0xff]
      %v346 = vld [vmem:[#allocation2 + $0x11] sm:$0xff]
      %v347 = vld [vmem:[#allocation2 + $0x21] sm:$0xff]
      %v348 = vld [vmem:[#allocation2 + $0x31] sm:$0xff]
      %v349 = vld [vmem:[#allocation2 + $0x41] sm:$0xff]
      %v350 = vld [vmem:[#allocation2 + $0x51] sm:$0xff]
      %v351 = vld [vmem:[#allocation2 + $0x61] sm:$0xff]
      %v352 = vld [vmem:[#allocation2 + $0x71] sm:$0xff]
      %361 = vrot.lane.b32.xlu0 %v345, 8
      %v362 = vpop.permute.xlu0 %361
      %363 = vrot.lane.b32.xlu0 %v346, 8
      %v364 = vpop.permute.xlu0 %363
      %365 = vrot.lane.b32.xlu0 %v347, 8
      %v366 = vpop.permute.xlu0 %365
      %367 = vrot.lane.b32.xlu0 %v348, 8
      %v368 = vpop.permute.xlu0 %367
      %369 = vrot.lane.b32.xlu0 %v349, 8
      %v370 = vpop.permute.xlu0 %369
      %371 = vrot.lane.b32.xlu0 %v350, 8
      %v372 = vpop.permute.xlu0 %371
      %373 = vrot.lane.b32.xlu0 %v351, 8
      %v374 = vpop.permute.xlu0 %373
      %375 = vrot.lane.b32.xlu0 %v352, 8
      %v376 = vpop.permute.xlu0 %375
      %vm385 = vcmask 130112
      %386 = vst.msk [vmem:[#allocation3] sm:$0xff] %vm385, %v362
      %387 = vst.msk [vmem:[#allocation3 + $0x8] sm:$0xff] %vm385, %v364
      %388 = vst.msk [vmem:[#allocation3 + $0x10] sm:$0xff] %vm385, %v366
      %389 = vst.msk [vmem:[#allocation3 + $0x18] sm:$0xff] %vm385, %v368
      %390 = vst.msk [vmem:[#allocation3 + $0x20] sm:$0xff] %vm385, %v370
      %391 = vst.msk [vmem:[#allocation3 + $0x28] sm:$0xff] %vm385, %v372
      %392 = vst.msk [vmem:[#allocation3 + $0x30] sm:$0xff] %vm385, %v374
      %393 = vst.msk [vmem:[#allocation3 + $0x38] sm:$0xff] %vm385, %v376
      %v394 = vld [vmem:[#allocation2 + $0x2] sm:$0xff]
      %v395 = vld [vmem:[#allocation2 + $0x12] sm:$0xff]
      %v396 = vld [vmem:[#allocation2 + $0x22] sm:$0xff]
      %v397 = vld [vmem:[#allocation2 + $0x32] sm:$0xff]
      %v398 = vld [vmem:[#allocation2 + $0x42] sm:$0xff]
      %v399 = vld [vmem:[#allocation2 + $0x52] sm:$0xff]
      %v400 = vld [vmem:[#allocation2 + $0x62] sm:$0xff]
      %v401 = vld [vmem:[#allocation2 + $0x72] sm:$0xff]
      %410 = vrot.lane.b32.xlu0 %v394, 16
      %v411 = vpop.permute.xlu0 %410
      %412 = vrot.lane.b32.xlu0 %v395, 16
      %v413 = vpop.permute.xlu0 %412
      %414 = vrot.lane.b32.xlu0 %v396, 16
      %v415 = vpop.permute.xlu0 %414
      %416 = vrot.lane.b32.xlu0 %v397, 16
      %v417 = vpop.permute.xlu0 %416
      %418 = vrot.lane.b32.xlu0 %v398, 16
      %v419 = vpop.permute.xlu0 %418
      %420 = vrot.lane.b32.xlu0 %v399, 16
      %v421 = vpop.permute.xlu0 %420
      %422 = vrot.lane.b32.xlu0 %v400, 16
      %v423 = vpop.permute.xlu0 %422
      %424 = vrot.lane.b32.xlu0 %v401, 16
      %v425 = vpop.permute.xlu0 %424
      %vm434 = vcmask 195712
      %435 = vst.msk [vmem:[#allocation3] sm:$0xff] %vm434, %v411
      %436 = vst.msk [vmem:[#allocation3 + $0x8] sm:$0xff] %vm434, %v413
      %437 = vst.msk [vmem:[#allocation3 + $0x10] sm:$0xff] %vm434, %v415
      %438 = vst.msk [vmem:[#allocation3 + $0x18] sm:$0xff] %vm434, %v417
      %439 = vst.msk [vmem:[#allocation3 + $0x20] sm:$0xff] %vm434, %v419
      %440 = vst.msk [vmem:[#allocation3 + $0x28] sm:$0xff] %vm434, %v421
      %441 = vst.msk [vmem:[#allocation3 + $0x30] sm:$0xff] %vm434, %v423
      %442 = vst.msk [vmem:[#allocation3 + $0x38] sm:$0xff] %vm434, %v425
      %v443 = vld [vmem:[%s319] sm:$0xff]
      %v444 = vld [vmem:[%s319 + $0x10] sm:$0xff]
      %v445 = vld [vmem:[%s319 + $0x20] sm:$0xff]
      %v446 = vld [vmem:[%s319 + $0x30] sm:$0xff]
      %v447 = vld [vmem:[%s319 + $0x40] sm:$0xff]
      %v448 = vld [vmem:[%s319 + $0x50] sm:$0xff]
      %v449 = vld [vmem:[%s319 + $0x60] sm:$0xff]
      %v450 = vld [vmem:[%s319 + $0x70] sm:$0xff]
      %459 = vrot.lane.b32.xlu0 %v443, 24
      %v460 = vpop.permute.xlu0 %459
      %461 = vrot.lane.b32.xlu0 %v444, 24
      %v462 = vpop.permute.xlu0 %461
      %463 = vrot.lane.b32.xlu0 %v445, 24
      %v464 = vpop.permute.xlu0 %463
      %465 = vrot.lane.b32.xlu0 %v446, 24
      %v466 = vpop.permute.xlu0 %465
      %467 = vrot.lane.b32.xlu0 %v447, 24
      %v468 = vpop.permute.xlu0 %467
      %469 = vrot.lane.b32.xlu0 %v448, 24
      %v470 = vpop.permute.xlu0 %469
      %471 = vrot.lane.b32.xlu0 %v449, 24
      %v472 = vpop.permute.xlu0 %471
      %473 = vrot.lane.b32.xlu0 %v450, 24
      %v474 = vpop.permute.xlu0 %473
      %vm483 = vcmask 261312
      %484 = vst.msk [vmem:[#allocation3] sm:$0xff] %vm483, %v460
      %485 = vst.msk [vmem:[#allocation3 + $0x8] sm:$0xff] %vm483, %v462
      %486 = vst.msk [vmem:[#allocation3 + $0x10] sm:$0xff] %vm483, %v464
      %487 = vst.msk [vmem:[#allocation3 + $0x18] sm:$0xff] %vm483, %v466
      %488 = vst.msk [vmem:[#allocation3 + $0x20] sm:$0xff] %vm483, %v468
      %489 = vst.msk [vmem:[#allocation3 + $0x28] sm:$0xff] %vm483, %v470
      %490 = vst.msk [vmem:[#allocation3 + $0x30] sm:$0xff] %vm483, %v472
      %491 = vst.msk [vmem:[#allocation3 + $0x38] sm:$0xff] %vm483, %v474
      %v492 = vld [vmem:[%s319 + $0x1] sm:$0xff]
      %v493 = vld [vmem:[%s319 + $0x11] sm:$0xff]
      %v494 = vld [vmem:[%s319 + $0x21] sm:$0xff]
      %v495 = vld [vmem:[%s319 + $0x31] sm:$0xff]
      %v496 = vld [vmem:[%s319 + $0x41] sm:$0xff]
      %v497 = vld [vmem:[%s319 + $0x51] sm:$0xff]
      %v498 = vld [vmem:[%s319 + $0x61] sm:$0xff]
      %v499 = vld [vmem:[%s319 + $0x71] sm:$0xff]
      %508 = vrot.lane.b32.xlu0 %v492, 32
      %v509 = vpop.permute.xlu0 %508
      %510 = vrot.lane.b32.xlu0 %v493, 32
      %v511 = vpop.permute.xlu0 %510
      %512 = vrot.lane.b32.xlu0 %v494, 32
      %v513 = vpop.permute.xlu0 %512
      %514 = vrot.lane.b32.xlu0 %v495, 32
      %v515 = vpop.permute.xlu0 %514
      %516 = vrot.lane.b32.xlu0 %v496, 32
      %v517 = vpop.permute.xlu0 %516
      %518 = vrot.lane.b32.xlu0 %v497, 32
      %v519 = vpop.permute.xlu0 %518
      %520 = vrot.lane.b32.xlu0 %v498, 32
      %v521 = vpop.permute.xlu0 %520
      %522 = vrot.lane.b32.xlu0 %v499, 32
      %v523 = vpop.permute.xlu0 %522
      %vm532 = vcmask 326912
      %533 = vst.msk [vmem:[#allocation3] sm:$0xff] %vm532, %v509
      %534 = vst.msk [vmem:[#allocation3 + $0x8] sm:$0xff] %vm532, %v511
      %535 = vst.msk [vmem:[#allocation3 + $0x10] sm:$0xff] %vm532, %v513
      %536 = vst.msk [vmem:[#allocation3 + $0x18] sm:$0xff] %vm532, %v515
      %537 = vst.msk [vmem:[#allocation3 + $0x20] sm:$0xff] %vm532, %v517
      %538 = vst.msk [vmem:[#allocation3 + $0x28] sm:$0xff] %vm532, %v519
      %539 = vst.msk [vmem:[#allocation3 + $0x30] sm:$0xff] %vm532, %v521
      %540 = vst.msk [vmem:[#allocation3 + $0x38] sm:$0xff] %vm532, %v523
      %v541 = vld [vmem:[%s319 + $0x2] sm:$0xff]
      %v542 = vld [vmem:[%s319 + $0x12] sm:$0xff]
      %v543 = vld [vmem:[%s319 + $0x22] sm:$0xff]
      %v544 = vld [vmem:[%s319 + $0x32] sm:$0xff]
      %v545 = vld [vmem:[%s319 + $0x42] sm:$0xff]
      %v546 = vld [vmem:[%s319 + $0x52] sm:$0xff]
      %v547 = vld [vmem:[%s319 + $0x62] sm:$0xff]
      %v548 = vld [vmem:[%s319 + $0x72] sm:$0xff]
      %557 = vrot.lane.b32.xlu0 %v541, 40
      %v558 = vpop.permute.xlu0 %557
      %559 = vrot.lane.b32.xlu0 %v542, 40
      %v560 = vpop.permute.xlu0 %559
      %561 = vrot.lane.b32.xlu0 %v543, 40
      %v562 = vpop.permute.xlu0 %561
      %563 = vrot.lane.b32.xlu0 %v544, 40
      %v564 = vpop.permute.xlu0 %563
      %565 = vrot.lane.b32.xlu0 %v545, 40
      %v566 = vpop.permute.xlu0 %565
      %567 = vrot.lane.b32.xlu0 %v546, 40
      %v568 = vpop.permute.xlu0 %567
      %569 = vrot.lane.b32.xlu0 %v547, 40
      %v570 = vpop.permute.xlu0 %569
      %571 = vrot.lane.b32.xlu0 %v548, 40
      %v572 = vpop.permute.xlu0 %571
      %vm581 = vcmask 392512
      %582 = vst.msk [vmem:[#allocation3] sm:$0xff] %vm581, %v558
      %583 = vst.msk [vmem:[#allocation3 + $0x8] sm:$0xff] %vm581, %v560
      %584 = vst.msk [vmem:[#allocation3 + $0x10] sm:$0xff] %vm581, %v562
      %585 = vst.msk [vmem:[#allocation3 + $0x18] sm:$0xff] %vm581, %v564
      %586 = vst.msk [vmem:[#allocation3 + $0x20] sm:$0xff] %vm581, %v566
      %587 = vst.msk [vmem:[#allocation3 + $0x28] sm:$0xff] %vm581, %v568
      %588 = vst.msk [vmem:[#allocation3 + $0x30] sm:$0xff] %vm581, %v570
      %589 = vst.msk [vmem:[#allocation3 + $0x38] sm:$0xff] %vm581, %v572
      %s590 = scalar_lea.vmem [#allocation2], 32
      %v591 = vld [vmem:[%s590] sm:$0xff]
      %v592 = vld [vmem:[%s590 + $0x10] sm:$0xff]
      %v593 = vld [vmem:[%s590 + $0x20] sm:$0xff]
      %v594 = vld [vmem:[%s590 + $0x30] sm:$0xff]
      %v595 = vld [vmem:[%s590 + $0x40] sm:$0xff]
      %v596 = vld [vmem:[%s590 + $0x50] sm:$0xff]
      %v597 = vld [vmem:[%s590 + $0x60] sm:$0xff]
      %v598 = vld [vmem:[%s590 + $0x70] sm:$0xff]
      %607 = vrot.lane.b32.xlu0 %v591, 48
      %v608 = vpop.permute.xlu0 %607
      %609 = vrot.lane.b32.xlu0 %v592, 48
      %v610 = vpop.permute.xlu0 %609
      %611 = vrot.lane.b32.xlu0 %v593, 48
      %v612 = vpop.permute.xlu0 %611
      %613 = vrot.lane.b32.xlu0 %v594, 48
      %v614 = vpop.permute.xlu0 %613
      %615 = vrot.lane.b32.xlu0 %v595, 48
      %v616 = vpop.permute.xlu0 %615
      %617 = vrot.lane.b32.xlu0 %v596, 48
      %v618 = vpop.permute.xlu0 %617
      %619 = vrot.lane.b32.xlu0 %v597, 48
      %v620 = vpop.permute.xlu0 %619
      %621 = vrot.lane.b32.xlu0 %v598, 48
      %v622 = vpop.permute.xlu0 %621
      %vm631 = vcmask 458112
      %632 = vst.msk [vmem:[#allocation3] sm:$0xff] %vm631, %v608
      %633 = vst.msk [vmem:[#allocation3 + $0x8] sm:$0xff] %vm631, %v610
      %634 = vst.msk [vmem:[#allocation3 + $0x10] sm:$0xff] %vm631, %v612
      %635 = vst.msk [vmem:[#allocation3 + $0x18] sm:$0xff] %vm631, %v614
      %636 = vst.msk [vmem:[#allocation3 + $0x20] sm:$0xff] %vm631, %v616
      %637 = vst.msk [vmem:[#allocation3 + $0x28] sm:$0xff] %vm631, %v618
      %638 = vst.msk [vmem:[#allocation3 + $0x30] sm:$0xff] %vm631, %v620
      %639 = vst.msk [vmem:[#allocation3 + $0x38] sm:$0xff] %vm631, %v622
      %v640 = vld [vmem:[%s590 + $0x1] sm:$0xff]
      %v641 = vld [vmem:[%s590 + $0x11] sm:$0xff]
      %v642 = vld [vmem:[%s590 + $0x21] sm:$0xff]
      %v643 = vld [vmem:[%s590 + $0x31] sm:$0xff]
      %v644 = vld [vmem:[%s590 + $0x41] sm:$0xff]
      %v645 = vld [vmem:[%s590 + $0x51] sm:$0xff]
      %v646 = vld [vmem:[%s590 + $0x61] sm:$0xff]
      %v647 = vld [vmem:[%s590 + $0x71] sm:$0xff]
      %656 = vrot.lane.b32.xlu0 %v640, 56
      %v657 = vpop.permute.xlu0 %656
      %658 = vrot.lane.b32.xlu0 %v641, 56
      %v659 = vpop.permute.xlu0 %658
      %660 = vrot.lane.b32.xlu0 %v642, 56
      %v661 = vpop.permute.xlu0 %660
      %662 = vrot.lane.b32.xlu0 %v643, 56
      %v663 = vpop.permute.xlu0 %662
      %664 = vrot.lane.b32.xlu0 %v644, 56
      %v665 = vpop.permute.xlu0 %664
      %666 = vrot.lane.b32.xlu0 %v645, 56
      %v667 = vpop.permute.xlu0 %666
      %668 = vrot.lane.b32.xlu0 %v646, 56
      %v669 = vpop.permute.xlu0 %668
      %670 = vrot.lane.b32.xlu0 %v647, 56
      %v671 = vpop.permute.xlu0 %670
      %vm680 = vcmask 523712
      %681 = vst.msk [vmem:[#allocation3] sm:$0xff] %vm680, %v657
      %682 = vst.msk [vmem:[#allocation3 + $0x8] sm:$0xff] %vm680, %v659
      %683 = vst.msk [vmem:[#allocation3 + $0x10] sm:$0xff] %vm680, %v661
      %684 = vst.msk [vmem:[#allocation3 + $0x18] sm:$0xff] %vm680, %v663
      %685 = vst.msk [vmem:[#allocation3 + $0x20] sm:$0xff] %vm680, %v665
      %686 = vst.msk [vmem:[#allocation3 + $0x28] sm:$0xff] %vm680, %v667
      %687 = vst.msk [vmem:[#allocation3 + $0x30] sm:$0xff] %vm680, %v669
      %688 = vst.msk [vmem:[#allocation3 + $0x38] sm:$0xff] %vm680, %v671
      %v689 = vld [vmem:[%s590 + $0x2] sm:$0xff]
      %v690 = vld [vmem:[%s590 + $0x12] sm:$0xff]
      %v691 = vld [vmem:[%s590 + $0x22] sm:$0xff]
      %v692 = vld [vmem:[%s590 + $0x32] sm:$0xff]
      %v693 = vld [vmem:[%s590 + $0x42] sm:$0xff]
      %v694 = vld [vmem:[%s590 + $0x52] sm:$0xff]
      %v695 = vld [vmem:[%s590 + $0x62] sm:$0xff]
      %v696 = vld [vmem:[%s590 + $0x72] sm:$0xff]
      %705 = vrot.lane.b32.xlu0 %v689, 64
      %v706 = vpop.permute.xlu0 %705
      %707 = vrot.lane.b32.xlu0 %v690, 64
      %v708 = vpop.permute.xlu0 %707
      %709 = vrot.lane.b32.xlu0 %v691, 64
      %v710 = vpop.permute.xlu0 %709
      %711 = vrot.lane.b32.xlu0 %v692, 64
      %v712 = vpop.permute.xlu0 %711
      %713 = vrot.lane.b32.xlu0 %v693, 64
      %v714 = vpop.permute.xlu0 %713
      %715 = vrot.lane.b32.xlu0 %v694, 64
      %v716 = vpop.permute.xlu0 %715
      %717 = vrot.lane.b32.xlu0 %v695, 64
      %v718 = vpop.permute.xlu0 %717
      %719 = vrot.lane.b32.xlu0 %v696, 64
      %v720 = vpop.permute.xlu0 %719
      %vm729 = vcmask 589312
      %730 = vst.msk [vmem:[#allocation3] sm:$0xff] %vm729, %v706
      %731 = vst.msk [vmem:[#allocation3 + $0x8] sm:$0xff] %vm729, %v708
      %732 = vst.msk [vmem:[#allocation3 + $0x10] sm:$0xff] %vm729, %v710
      %733 = vst.msk [vmem:[#allocation3 + $0x18] sm:$0xff] %vm729, %v712
      %734 = vst.msk [vmem:[#allocation3 + $0x20] sm:$0xff] %vm729, %v714
      %735 = vst.msk [vmem:[#allocation3 + $0x28] sm:$0xff] %vm729, %v716
      %736 = vst.msk [vmem:[#allocation3 + $0x30] sm:$0xff] %vm729, %v718
      %737 = vst.msk [vmem:[#allocation3 + $0x38] sm:$0xff] %vm729, %v720
      %v738 = vld [vmem:[#allocation3] sm:$0xff]
      %v739 = vld [vmem:[#allocation3 + $0x8] sm:$0xff]
      %v740 = vld [vmem:[#allocation3 + $0x10] sm:$0xff]
      %v741 = vld [vmem:[#allocation3 + $0x18] sm:$0xff]
      %v742 = vld [vmem:[#allocation3 + $0x20] sm:$0xff]
      %v743 = vld [vmem:[#allocation3 + $0x28] sm:$0xff]
      %v744 = vld [vmem:[#allocation3 + $0x30] sm:$0xff]
      %v745 = vld [vmem:[#allocation3 + $0x38] sm:$0xff]
      %v746 = vpack.c.bf16 %v739, %v738
      %v747 = vpack.c.bf16 %v741, %v740
      %v748 = vpack.c.bf16 %v743, %v742
      %v749 = vpack.c.bf16 %v745, %v744
      %v750 = vld [vmem:[%s3] sm:$0xf]
      %v751 = vld [vmem:[%s3 + $0x4] sm:$0xf]
      %v752 = vld [vmem:[%s3 + $0x8] sm:$0xf]
      %v753 = vld [vmem:[%s3 + $0xc] sm:$0xf]
      %v754 = vld [vmem:[%s3 + $0x10] sm:$0xf]
      %v755 = vld [vmem:[%s3 + $0x14] sm:$0xf]
      %v756 = vld [vmem:[%s3 + $0x18] sm:$0xf]
      %v757 = vld [vmem:[%s3 + $0x1c] sm:$0xf]
      %v758 = vld [vmem:[%s3 + $0x20] sm:$0xf]
      %v759 = vld [vmem:[%s3 + $0x24] sm:$0xf]
      %v760 = vld [vmem:[%s3 + $0x28] sm:$0xf]
      %v761 = vld [vmem:[%s3 + $0x2c] sm:$0xf]
      %v762 = vld [vmem:[%s3 + $0x30] sm:$0xf]
      %v763 = vld [vmem:[%s3 + $0x34] sm:$0xf]
      %v764 = vld [vmem:[%s3 + $0x38] sm:$0xf]
      %v765 = vld [vmem:[%s3 + $0x3c] sm:$0xf]
      %v782 = vunpack.c.l.b16 %v750
      %v783 = vunpack.c.l.b16 %v751
      %v784 = vunpack.c.l.b16 %v752
      %v785 = vunpack.c.l.b16 %v753
      %v786 = vunpack.c.l.b16 %v754
      %v787 = vunpack.c.l.b16 %v755
      %v788 = vunpack.c.l.b16 %v756
      %v789 = vunpack.c.l.b16 %v757
      %v790 = vunpack.c.l.b16 %v758
      %v791 = vunpack.c.l.b16 %v759
      %v792 = vunpack.c.l.b16 %v760
      %v793 = vunpack.c.l.b16 %v761
      %v794 = vunpack.c.l.b16 %v762
      %v795 = vunpack.c.l.b16 %v763
      %v796 = vunpack.c.l.b16 %v764
      %v797 = vunpack.c.l.b16 %v765
      %v798 = vpack.c.b16 %v783, %v782
      %v799 = vpack.c.b16 %v785, %v784
      %v800 = vpack.c.b16 %v787, %v786
      %v801 = vpack.c.b16 %v789, %v788
      %v802 = vpack.c.b16 %v791, %v790
      %v803 = vpack.c.b16 %v793, %v792
      %v804 = vpack.c.b16 %v795, %v794
      %v805 = vpack.c.b16 %v797, %v796
      %814 = vmatprep.subr.bf16.mxu0 0
      %815 = vmatpush1.bf16.msra.mxu0 %v798
      %816 = vmatprep.subr.bf16.mxu0 0
      %817 = vmatpush1.bf16.msra.mxu0 %v799
      %818 = vmatprep.subr.bf16.mxu0 0
      %819 = vmatpush1.bf16.msra.mxu0 %v800
      %820 = vmatprep.subr.bf16.mxu0 0
      %821 = vmatpush1.bf16.msra.mxu0 %v801
      %822 = vmatprep.subr.bf16.mxu0 0
      %823 = vmatpush1.bf16.msra.mxu0 %v802
      %824 = vmatprep.subr.bf16.mxu0 0
      %825 = vmatpush1.bf16.msra.mxu0 %v803
      %826 = vmatprep.subr.bf16.mxu0 0
      %827 = vmatpush1.bf16.msra.mxu0 %v804
      %828 = vmatprep.subr.bf16.mxu0 0
      %829 = vmatpush1.bf16.msra.mxu0 %v805
      %830 = vmatprep.subr.bf16.mxu0 0
      %831 = vmatpush1.bf16.msra.mxu0 0
      %832 = vmatprep.subr.bf16.mxu0 0
      %833 = vmatpush1.bf16.msra.mxu0 0
      %834 = vmatprep.subr.bf16.mxu0 0
      %835 = vmatpush1.bf16.msra.mxu0 0
      %836 = vmatprep.subr.bf16.mxu0 0
      %837 = vmatpush1.bf16.msra.mxu0 0
      %838 = vmatprep.subr.bf16.mxu0 0
      %839 = vmatpush1.bf16.msra.mxu0 0
      %840 = vmatprep.subr.bf16.mxu0 0
      %841 = vmatpush1.bf16.msra.mxu0 0
      %842 = vmatprep.subr.bf16.mxu0 0
      %843 = vmatpush1.bf16.msra.mxu0 0
      %844 = vmatprep.subr.bf16.mxu0 0
      %845 = vmatpush1.bf16.msra.mxu0 0
      %846 = vmatprep.mubr.bf16.mxu0 0
      %847 = vmatmul.mubr.bf16.gmra.mrb[0].mxu0 %v746
      %v848 = vpop.f32.mrb[0].mxu0
      %v849 = vadd.f32 0.0, %v848
      %v850 = vpop.f32.mrb[0].mxu0
      %v851 = vpop.f32.mrb[0].mxu0
      %v852 = vadd.f32 0.0, %v851
      %v853 = vpop.f32.mrb[0].mxu0
      %854 = vmatprep.mubr.bf16.mxu0 0
      %855 = vmatmul.mubr.bf16.gmra.mrb[0].mxu0 %v747
      %v856 = vpop.f32.mrb[0].mxu0
      %v857 = vadd.f32 0.0, %v856
      %v858 = vpop.f32.mrb[0].mxu0
      %v859 = vpop.f32.mrb[0].mxu0
      %v860 = vadd.f32 0.0, %v859
      %v861 = vpop.f32.mrb[0].mxu0
      %862 = vmatprep.mubr.bf16.mxu0 0
      %863 = vmatmul.mubr.bf16.gmra.mrb[0].mxu0 %v748
      %v864 = vpop.f32.mrb[0].mxu0
      %v865 = vadd.f32 0.0, %v864
      %v866 = vpop.f32.mrb[0].mxu0
      %v867 = vpop.f32.mrb[0].mxu0
      %v868 = vadd.f32 0.0, %v867
      %v869 = vpop.f32.mrb[0].mxu0
      %870 = vmatprep.mubr.bf16.mxu0 0
      %871 = vmatmul.mubr.bf16.gmra.mrb[0].mxu0 %v749
      %v872 = vpop.f32.mrb[0].mxu0
      %v873 = vadd.f32 0.0, %v872
      %v874 = vpop.f32.mrb[0].mxu0
      %v875 = vpop.f32.mrb[0].mxu0
      %v876 = vadd.f32 0.0, %v875
      %v877 = vpop.f32.mrb[0].mxu0
      %878 = vdwg.mxu0
      %v879 = vld [vmem:[%s192] sm:$0xf]
      %v880 = vld [vmem:[%s192 + $0x4] sm:$0xf]
      %v881 = vld [vmem:[%s192 + $0x8] sm:$0xf]
      %v882 = vld [vmem:[%s192 + $0xc] sm:$0xf]
      %v883 = vld [vmem:[%s192 + $0x10] sm:$0xf]
      %v884 = vld [vmem:[%s192 + $0x14] sm:$0xf]
      %v885 = vld [vmem:[%s192 + $0x18] sm:$0xf]
      %v886 = vld [vmem:[%s192 + $0x1c] sm:$0xf]
      %v887 = vunpack.c.l.bf16 %v879
      %v888 = vunpack.c.l.bf16 %v880
      %v889 = vunpack.c.l.bf16 %v881
      %v890 = vunpack.c.l.bf16 %v882
      %v891 = vunpack.c.l.bf16 %v883
      %v892 = vunpack.c.l.bf16 %v884
      %v893 = vunpack.c.l.bf16 %v885
      %v894 = vunpack.c.l.bf16 %v886
      %v895 = vadd.f32 %v849, %v887
      %v896 = vadd.f32 %v852, %v888
      %v897 = vadd.f32 %v857, %v889
      %v898 = vadd.f32 %v860, %v890
      %v899 = vadd.f32 %v865, %v891
      %v900 = vadd.f32 %v868, %v892
      %v901 = vadd.f32 %v873, %v893
      %v902 = vadd.f32 %v876, %v894
      %903 = vst [vmem:[%s197] sm:$0xff] %v895
      %904 = vst [vmem:[%s197 + $0x8] sm:$0xff] %v896
      %905 = vst [vmem:[%s197 + $0x10] sm:$0xff] %v897
      %906 = vst [vmem:[%s197 + $0x18] sm:$0xff] %v898
      %907 = vst [vmem:[%s197 + $0x20] sm:$0xff] %v899
      %908 = vst [vmem:[%s197 + $0x28] sm:$0xff] %v900
      %909 = vst [vmem:[%s197 + $0x30] sm:$0xff] %v901
      %910 = vst [vmem:[%s197 + $0x38] sm:$0xff] %v902
      %p911 = scmp.lt.s32.totalorder %s15, 1
      %s912 = scalar_select %p911, %s15, 1
      %s913 = smul.addr %s912, 8
      %s914 = smul.addr %s913, 8
      %s915 = scalar_lea.vmem %s4, %s914
      // Predicated region
      $region41: #{down_forward.5} parent=35 // pred_check
        %p916 = pneg %p122
      $region42: #{down_forward.5} parent=35 // pred_check_branch
        %918 = sbr.rel (%p916) target = $region44
      $region43: #{down_forward.5} parent=35 // pred_region
        _
      $region44: #{down_forward.5} parent=35 // pred_fallthru
        _
    $region36: #{down_forward.5} parent=5 // pred_fallthru
      _
    %p919 = scmp.le.s32.totalorder 2, %s10
    // Predicated region
    $region45: #{down_forward.5} parent=5 // pred_check
      %p920 = pneg %p919
    $region46: #{down_forward.5} parent=5 // pred_check_branch
      %922 = sbr.rel (%p920) target = $region48
    $region47: #{down_forward.5} parent=5 // pred_region
      %s923 = ssub.s32 %s10, 2
      // Predicated region
      $region49: #{down_forward.5} parent=47 // pred_check
        %p924 = pneg %p128
      $region50: #{down_forward.5} parent=47 // pred_check_branch
        %926 = sbr.rel (%p924) target = $region52
      $region51: #{down_forward.5} parent=47 // pred_region
        %p927 = scmp.lt.s32.totalorder %s16, 1
        %s928 = scalar_select %p927, %s16, 1
        %s929 = smul.addr %s928, 8
        %s930 = smul.addr %s929, 8
        %s931 = scalar_lea.vmem %s4, %s930
      $region52: #{down_forward.5} parent=47 // pred_fallthru
        _
    $region48: #{down_forward.5} parent=5 // pred_fallthru
      _
  $region6: #{down_forward.5} parent=0 // loop_footer
    %s14 = sadd.s32 1, %s10
  $region7: #{down_forward.5} parent=0 // loop_footer_branch
    %9 = sbr.rel target = $region3
  $region8: #{down_forward.5} parent=0 // loop_exit
    _

</llo_original>
